<compile_context>
chip_gen: v5e
topology: v5e:2x2
jax: 0.10.0
libtpu: 0.0.40
codegen_flags: <defaults>
</compile_context>

<pallas_src>
import math
from functools import partial

import jax
import jax.numpy as jnp
from jax.experimental import pallas as pl
from jax.experimental.pallas import tpu as pltpu  # noqa: F401  (TPU backend assumed)

# ------------------------- mini-BERT config -------------------------
B = 2            # batch
S = 8            # sequence length
H = 32           # hidden size
NUM_HEADS = 2
HEAD_DIM = H // NUM_HEADS
I = 64           # FFN intermediate size
VOCAB = 50
TYPE_VOCAB = 2
MAX_POS = 16
NUM_LAYERS = 2
LN_EPS = 1e-12
OUTPUT_WAY = "pooler"   # module supports 'cls' or 'pooler'

# vector-slab row layout: [emb_ln_g, emb_ln_b, pooler_b,
#                          per layer: ln1_g, ln1_b, b2, ln2_g, ln2_b]
_VEC_LAYER_ROWS = 5
_VEC_LAYER_BASE = 3


# ------------------------- in-kernel helpers -------------------------
def _layer_norm(x, gamma, beta):
    mu = jnp.mean(x, axis=-1, keepdims=True)
    var = jnp.mean(jnp.square(x - mu), axis=-1, keepdims=True)
    return (x - mu) * jax.lax.rsqrt(var + LN_EPS) * gamma + beta


def _gelu(x):
    # TODO(synk): HF BERT default is the exact erf GELU; tanh approximation used here.
    return 0.5 * x * (1.0 + jnp.tanh(0.7978845608028654 * (x + 0.044715 * x * x * x)))


# ------------------------- fused encoder body (shared by both kernels) ---------
def _encoder_cls(emb_ref, mask_ref, vec_ref, wattn_ref, battn_ref,
                 w1_ref, b1_ref, w2_ref):
    """Runs the full encoder; returns the (B, H) CLS hidden state."""
    scale = 1.0 / math.sqrt(HEAD_DIM)

    # layer-invariant additive attention-mask bias, hoisted out of the layer loop
    bias = ((1.0 - mask_ref[...]) * (-1e4))[:, None, :]              # (B, 1, S)

    # embeddings layernorm — hidden state stays resident from here on
    hidden = _layer_norm(emb_ref[...], vec_ref[0:1, :], vec_ref[1:2, :])   # (B*S, H)

    for l in range(NUM_LAYERS):                                      # static unroll
        x = hidden

        w_attn = wattn_ref[l]                                        # (H, 4H)
        b_attn = battn_ref[l]                                        # (1, 4H)
        r = _VEC_LAYER_BASE + _VEC_LAYER_ROWS * l
        ln1_g = vec_ref[r + 0:r + 1, :]
        ln1_b = vec_ref[r + 1:r + 2, :]
        b2    = vec_ref[r + 2:r + 3, :]
        ln2_g = vec_ref[r + 3:r + 4, :]
        ln2_b = vec_ref[r + 4:r + 5, :]

        # one QKV projection for all B*S rows: (16,32) @ (32,96)
        qkv = jnp.dot(x, w_attn[:, :3 * H],
                      preferred_element_type=jnp.float32) + b_attn[:, :3 * H]
        qkv = qkv.reshape(B, S, 3 * H)                               # sublane regroup only

        ctx_heads = []
        for h in range(NUM_HEADS):                                   # static unroll (2)
            qh = qkv[:, :, h * HEAD_DIM:(h + 1) * HEAD_DIM]                  # (B, S, HD)
            kh = qkv[:, :, H + h * HEAD_DIM:H + (h + 1) * HEAD_DIM]          # (B, S, HD)
            vh = qkv[:, :, 2 * H + h * HEAD_DIM:2 * H + (h + 1) * HEAD_DIM]  # (B, S, HD)

            # batched over B in a single dot_general
            scores = jnp.einsum('bqd,bkd->bqk', qh, kh,
                                preferred_element_type=jnp.float32) * scale + bias
            m = jnp.max(scores, axis=-1, keepdims=True)
            e = jnp.exp(scores - m)
            p = e / jnp.sum(e, axis=-1, keepdims=True)               # exact softmax
            ctx_heads.append(jnp.einsum('bqk,bkd->bqd', p, vh,
                                        preferred_element_type=jnp.float32))  # (B, S, HD)

        # lane-concat the heads (intra-vreg) and do ONE output projection
        ctx = jnp.concatenate(ctx_heads, axis=-1).reshape(B * S, H)  # (B*S, H)
        attn_out = jnp.dot(ctx, w_attn[:, 3 * H:],
                           preferred_element_type=jnp.float32) + b_attn[:, 3 * H:]

        h1 = _layer_norm(x + attn_out, ln1_g, ln1_b)

        ff = _gelu(jnp.dot(h1, w1_ref[l], preferred_element_type=jnp.float32) + b1_ref[l])
        ff2 = jnp.dot(ff, w2_ref[l], preferred_element_type=jnp.float32) + b2
        hidden = _layer_norm(h1 + ff2, ln2_g, ln2_b)

    # CLS rows (row b*S of each batch element) — static sublane gather
    return jnp.concatenate([hidden[b * S:b * S + 1, :] for b in range(B)], axis=0)


# ------------------------- output-way-specialized kernels -------------------------
def _cls_kernel(emb_ref, mask_ref, vec_ref, wattn_ref, battn_ref,
                w1_ref, b1_ref, w2_ref, out_ref):
    out_ref[...] = _encoder_cls(emb_ref, mask_ref, vec_ref, wattn_ref, battn_ref,
                                w1_ref, b1_ref, w2_ref)


def _pooler_kernel(emb_ref, mask_ref, vec_ref, wattn_ref, battn_ref,
                   w1_ref, b1_ref, w2_ref, pw_ref, out_ref):
    cls = _encoder_cls(emb_ref, mask_ref, vec_ref, wattn_ref, battn_ref,
                       w1_ref, b1_ref, w2_ref)
    out_ref[...] = jnp.tanh(
        jnp.dot(cls, pw_ref[...], preferred_element_type=jnp.float32)
        + vec_ref[2:3, :])                                           # pooler bias row


def fused_forward(emb_flat, mask_f32, prep, output_way):
    """Single grid-less pallas_call for the whole encoder + selected head."""
    out_shape = jax.ShapeDtypeStruct((B, H), jnp.float32)
    common = (emb_flat, mask_f32, prep["vec"], prep["w_attn"], prep["b_attn"],
              prep["w1"], prep["b1"], prep["w2"])
    if output_way == "pooler":
        return pl.pallas_call(_pooler_kernel, out_shape=out_shape)(
            *common, prep["pooler_w"])
    elif output_way == "cls":
        return pl.pallas_call(_cls_kernel, out_shape=out_shape)(*common)
    else:
        raise ValueError(output_way)


# ------------------------- host-side weight packing (runs ONCE, outside jit) ----
def prepare_weights(params):
    layers = params["layers"]
    w_attn = jnp.stack([jnp.concatenate([lp["wq"], lp["wk"], lp["wv"], lp["wo"]], axis=1)
                        for lp in layers], axis=0)                   # (L, H, 4H)
    b_attn = jnp.stack([jnp.concatenate([lp["bq"], lp["bk"], lp["bv"], lp["bo"]], axis=1)
                        for lp in layers], axis=0)                   # (L, 1, 4H)
    w1 = jnp.stack([lp["w1"] for lp in layers], axis=0)              # (L, H, I)
    b1 = jnp.stack([lp["b1"] for lp in layers], axis=0)              # (L, 1, I)
    w2 = jnp.stack([lp["w2"] for lp in layers], axis=0)              # (L, I, H)

    vec_rows = [params["emb_ln_g"], params["emb_ln_b"], params["pooler_b"]]
    for lp in layers:
        vec_rows += [lp["ln1_g"], lp["ln1_b"], lp["b2"], lp["ln2_g"], lp["ln2_b"]]
    vec = jnp.concatenate(vec_rows, axis=0)                          # (3 + 5L, H)

    prep = {
        "word_emb": params["word_emb"], "pos_emb": params["pos_emb"],
        "type_emb": params["type_emb"],
        "vec": vec, "w_attn": w_attn, "b_attn": b_attn,
        "w1": w1, "b1": b1, "w2": w2,
        "pooler_w": params["pooler_w"],
    }
    return jax.tree_util.tree_map(jnp.asarray, prep)


# ------------------------- model forward -------------------------
@partial(jax.jit, static_argnames=("output_way",))
def bert_forward(prep, input_ids, attention_mask, token_type_ids,
                 output_way=OUTPUT_WAY):
    # Embedding gather is glue (data-dependent indexing) — done in plain JAX.
    emb = (prep["word_emb"][input_ids]
           + prep["pos_emb"][jnp.arange(S)][None, :, :]
           + prep["type_emb"][token_type_ids]).astype(jnp.float32)
    emb_flat = emb.reshape(B * S, H)
    mask_f32 = attention_mask.astype(jnp.float32).reshape(B, S)
    return fused_forward(emb_flat, mask_f32, prep, output_way)


# ------------------------- deterministic params -------------------------
def init_params(key):
    keys = iter(jax.random.split(key, 128))

    def nrm(shape, scale=0.02):
        return (scale * jax.random.normal(next(keys), shape)).astype(jnp.float32)

    params = {
        "word_emb": nrm((VOCAB, H)),
        "pos_emb": nrm((MAX_POS, H)),
        "type_emb": nrm((TYPE_VOCAB, H)),
        "emb_ln_g": jnp.ones((1, H), jnp.float32),
        "emb_ln_b": jnp.zeros((1, H), jnp.float32),
        "pooler_w": nrm((H, H)),
        "pooler_b": jnp.zeros((1, H), jnp.float32),
        "layers": [],
    }
    for _ in range(NUM_LAYERS):
        params["layers"].append({
            "wq": nrm((H, H)), "bq": jnp.zeros((1, H), jnp.float32),
            "wk": nrm((H, H)), "bk": jnp.zeros((1, H), jnp.float32),
            "wv": nrm((H, H)), "bv": jnp.zeros((1, H), jnp.float32),
            "wo": nrm((H, H)), "bo": jnp.zeros((1, H), jnp.float32),
            "ln1_g": jnp.ones((1, H), jnp.float32),
            "ln1_b": jnp.zeros((1, H), jnp.float32),
            "w1": nrm((H, I)), "b1": jnp.zeros((1, I), jnp.float32),
            "w2": nrm((I, H)), "b2": jnp.zeros((1, H), jnp.float32),
            "ln2_g": jnp.ones((1, H), jnp.float32),
            "ln2_b": jnp.zeros((1, H), jnp.float32),
        })
    return params


# ------------------------- main -------------------------
if __name__ == "__main__":
    key = jax.random.PRNGKey(0)
    pkey, ikey = jax.random.split(key)
    params = init_params(pkey)

    # TODO(synk): real module loads pretrained HuggingFace weights; synthetic
    # deterministic weights are used instead.
    # Weight packing runs ONCE here (weight-load time), NOT in the per-call path.
    prep = jax.block_until_ready(prepare_weights(params))

    input_ids = jax.random.randint(ikey, (B, S), 0, VOCAB, dtype=jnp.int32)
    attention_mask = jnp.ones((B, S), dtype=jnp.int32).at[:, -2:].set(0)  # pad last 2 tokens
    token_type_ids = jnp.zeros((B, S), dtype=jnp.int32).at[:, S // 2:].set(1)

    out_pooler = bert_forward(prep, input_ids, attention_mask, token_type_ids,
                              output_way="pooler")
    out_cls = bert_forward(prep, input_ids, attention_mask, token_type_ids,
                           output_way="cls")
    jax.block_until_ready(out_pooler)
    jax.block_until_ready(out_cls)

    assert out_pooler.shape == (B, H) and out_cls.shape == (B, H)
    assert bool(jnp.all(jnp.isfinite(out_pooler))) and bool(jnp.all(jnp.isfinite(out_cls)))
    print("KERNEL_OK")
</pallas_src>

<mosaic_0001>
module attributes {stable_mosaic.version = 11 : i64} {
  func.func @_pooler_kernel(%arg0: memref<16x32xf32, #tpu.memory_space<vmem>>, %arg1: memref<2x8xf32, #tpu.memory_space<vmem>>, %arg2: memref<13x32xf32, #tpu.memory_space<vmem>>, %arg3: memref<2x32x128xf32, #tpu.memory_space<vmem>>, %arg4: memref<2x1x128xf32, #tpu.memory_space<vmem>>, %arg5: memref<2x32x64xf32, #tpu.memory_space<vmem>>, %arg6: memref<2x1x64xf32, #tpu.memory_space<vmem>>, %arg7: memref<2x64x32xf32, #tpu.memory_space<vmem>>, %arg8: memref<32x32xf32, #tpu.memory_space<vmem>>, %arg9: memref<2x32xf32, #tpu.memory_space<vmem>>) attributes {dimension_semantics = [], scalar_prefetch = 0 : i64, scratch_operands = 0 : i64, tpu.core_type = #tpu.core_type<tc>} {
    %c0 = arith.constant 0 : index
    %c0_0 = arith.constant 0 : index
    %0 = vector.load %arg1[%c0, %c0_0] : memref<2x8xf32, #tpu.memory_space<vmem>>, vector<2x8xf32>
    %cst = arith.constant 1.000000e+00 : f32
    %1 = vector.broadcast %cst : f32 to vector<2x8xf32>
    %2 = arith.subf %1, %0 : vector<2x8xf32>
    %cst_1 = arith.constant -1.000000e+04 : f32
    %3 = vector.broadcast %cst_1 : f32 to vector<2x8xf32>
    %4 = arith.mulf %2, %3 : vector<2x8xf32>
    %5 = vector.shape_cast %4 : vector<2x8xf32> to vector<2x1x8xf32>
    %c0_2 = arith.constant 0 : index
    %c0_3 = arith.constant 0 : index
    %6 = vector.load %arg0[%c0_2, %c0_3] : memref<16x32xf32, #tpu.memory_space<vmem>>, vector<16x32xf32>
    %c0_4 = arith.constant 0 : index
    %c0_5 = arith.constant 0 : index
    %7 = vector.load %arg2[%c0_4, %c0_5] : memref<13x32xf32, #tpu.memory_space<vmem>>, vector<1x32xf32>
    %c1 = arith.constant 1 : index
    %c0_6 = arith.constant 0 : index
    %8 = vector.load %arg2[%c1, %c0_6] : memref<13x32xf32, #tpu.memory_space<vmem>>, vector<1x32xf32>
    %cst_7 = arith.constant dense<0.000000e+00> : vector<16xf32>
    %9 = vector.multi_reduction <add>, %6, %cst_7 [1] : vector<16x32xf32> to vector<16xf32>
    %10 = vector.shape_cast %9 : vector<16xf32> to vector<16x1xf32>
    %cst_8 = arith.constant 3.200000e+01 : f32
    %11 = vector.broadcast %cst_8 : f32 to vector<16x1xf32>
    %12 = arith.divf %10, %11 : vector<16x1xf32>
    %13 = vector.broadcast %12 : vector<16x1xf32> to vector<16x32xf32>
    %14 = arith.subf %6, %13 : vector<16x32xf32>
    %15 = arith.mulf %14, %14 : vector<16x32xf32>
    %cst_9 = arith.constant dense<0.000000e+00> : vector<16xf32>
    %16 = vector.multi_reduction <add>, %15, %cst_9 [1] : vector<16x32xf32> to vector<16xf32>
    %17 = vector.shape_cast %16 : vector<16xf32> to vector<16x1xf32>
    %cst_10 = arith.constant 3.200000e+01 : f32
    %18 = vector.broadcast %cst_10 : f32 to vector<16x1xf32>
    %19 = arith.divf %17, %18 : vector<16x1xf32>
    %20 = vector.broadcast %12 : vector<16x1xf32> to vector<16x32xf32>
    %21 = arith.subf %6, %20 : vector<16x32xf32>
    %cst_11 = arith.constant 9.99999996E-13 : f32
    %22 = vector.broadcast %cst_11 : f32 to vector<16x1xf32>
    %23 = arith.addf %19, %22 : vector<16x1xf32>
    %24 = math.rsqrt %23 : vector<16x1xf32>
    %25 = vector.broadcast %24 : vector<16x1xf32> to vector<16x32xf32>
    %26 = arith.mulf %21, %25 : vector<16x32xf32>
    %27 = vector.broadcast %7 : vector<1x32xf32> to vector<16x32xf32>
    %28 = arith.mulf %26, %27 : vector<16x32xf32>
    %29 = vector.broadcast %8 : vector<1x32xf32> to vector<16x32xf32>
    %30 = arith.addf %28, %29 : vector<16x32xf32>
    %c0_12 = arith.constant 0 : index
    %c0_13 = arith.constant 0 : index
    %c0_14 = arith.constant 0 : index
    %31 = vector.load %arg3[%c0_12, %c0_13, %c0_14] : memref<2x32x128xf32, #tpu.memory_space<vmem>>, vector<1x32x128xf32>
    %32 = vector.shape_cast %31 : vector<1x32x128xf32> to vector<32x128xf32>
    %c0_15 = arith.constant 0 : index
    %c0_16 = arith.constant 0 : index
    %c0_17 = arith.constant 0 : index
    %33 = vector.load %arg4[%c0_15, %c0_16, %c0_17] : memref<2x1x128xf32, #tpu.memory_space<vmem>>, vector<1x1x128xf32>
    %34 = vector.shape_cast %33 : vector<1x1x128xf32> to vector<1x128xf32>
    %c3 = arith.constant 3 : index
    %c0_18 = arith.constant 0 : index
    %35 = vector.load %arg2[%c3, %c0_18] : memref<13x32xf32, #tpu.memory_space<vmem>>, vector<1x32xf32>
    %c4 = arith.constant 4 : index
    %c0_19 = arith.constant 0 : index
    %36 = vector.load %arg2[%c4, %c0_19] : memref<13x32xf32, #tpu.memory_space<vmem>>, vector<1x32xf32>
    %c5 = arith.constant 5 : index
    %c0_20 = arith.constant 0 : index
    %37 = vector.load %arg2[%c5, %c0_20] : memref<13x32xf32, #tpu.memory_space<vmem>>, vector<1x32xf32>
    %c6 = arith.constant 6 : index
    %c0_21 = arith.constant 0 : index
    %38 = vector.load %arg2[%c6, %c0_21] : memref<13x32xf32, #tpu.memory_space<vmem>>, vector<1x32xf32>
    %c7 = arith.constant 7 : index
    %c0_22 = arith.constant 0 : index
    %39 = vector.load %arg2[%c7, %c0_22] : memref<13x32xf32, #tpu.memory_space<vmem>>, vector<1x32xf32>
    %40 = vector.extract_strided_slice %32 {offsets = [0, 0], sizes = [32, 96], strides = [1, 1]} : vector<32x128xf32> to vector<32x96xf32>
    %cst_23 = arith.constant dense<0.000000e+00> : vector<16x96xf32>
    %41 = tpu.matmul %30, %40, %cst_23 {dimension_numbers = #tpu.dot_dimension_numbers<[1], [0], [0], [1], [0, 0, 1, 1], [], []>} : vector<16x32xf32>, vector<32x96xf32>, vector<16x96xf32> -> vector<16x96xf32>
    %42 = vector.extract_strided_slice %34 {offsets = [0, 0], sizes = [1, 96], strides = [1, 1]} : vector<1x128xf32> to vector<1x96xf32>
    %43 = vector.broadcast %42 : vector<1x96xf32> to vector<16x96xf32>
    %44 = arith.addf %41, %43 : vector<16x96xf32>
    %45 = vector.shape_cast %44 : vector<16x96xf32> to vector<2x8x96xf32>
    %46 = vector.extract_strided_slice %45 {offsets = [0, 0, 0], sizes = [2, 8, 16], strides = [1, 1, 1]} : vector<2x8x96xf32> to vector<2x8x16xf32>
    %47 = vector.extract_strided_slice %45 {offsets = [0, 0, 32], sizes = [2, 8, 16], strides = [1, 1, 1]} : vector<2x8x96xf32> to vector<2x8x16xf32>
    %48 = vector.extract_strided_slice %45 {offsets = [0, 0, 64], sizes = [2, 8, 16], strides = [1, 1, 1]} : vector<2x8x96xf32> to vector<2x8x16xf32>
    "tpu.trace_start"() <{level = 10 : i32, message = "bqd,bkd->bqk"}> : () -> ()
    %cst_24 = arith.constant dense<0.000000e+00> : vector<2x8x8xf32>
    %49 = tpu.matmul %46, %47, %cst_24 {dimension_numbers = #tpu.dot_dimension_numbers<[2], [2], [1], [1], [0, 0, 0, 1, 1, 1], [0], [0]>} : vector<2x8x16xf32>, vector<2x8x16xf32>, vector<2x8x8xf32> -> vector<2x8x8xf32>
    "tpu.trace_stop"() : () -> ()
    %cst_25 = arith.constant 2.500000e-01 : f32
    %50 = vector.broadcast %cst_25 : f32 to vector<2x8x8xf32>
    %51 = arith.mulf %49, %50 : vector<2x8x8xf32>
    %52 = vector.broadcast %5 : vector<2x1x8xf32> to vector<2x8x8xf32>
    %53 = arith.addf %51, %52 : vector<2x8x8xf32>
    %cst_26 = arith.constant dense<0xFF800000> : vector<2x8xf32>
    %54 = vector.multi_reduction <maximumf>, %53, %cst_26 [2] : vector<2x8x8xf32> to vector<2x8xf32>
    %55 = vector.shape_cast %54 : vector<2x8xf32> to vector<2x8x1xf32>
    %56 = vector.broadcast %55 : vector<2x8x1xf32> to vector<2x8x8xf32>
    %57 = arith.subf %53, %56 : vector<2x8x8xf32>
    %58 = math.exp %57 : vector<2x8x8xf32>
    %cst_27 = arith.constant dense<0.000000e+00> : vector<2x8xf32>
    %59 = vector.multi_reduction <add>, %58, %cst_27 [2] : vector<2x8x8xf32> to vector<2x8xf32>
    %60 = vector.shape_cast %59 : vector<2x8xf32> to vector<2x8x1xf32>
    %61 = vector.broadcast %60 : vector<2x8x1xf32> to vector<2x8x8xf32>
    %62 = arith.divf %58, %61 : vector<2x8x8xf32>
    "tpu.trace_start"() <{level = 10 : i32, message = "bqk,bkd->bqd"}> : () -> ()
    %cst_28 = arith.constant dense<0.000000e+00> : vector<2x8x16xf32>
    %63 = tpu.matmul %62, %48, %cst_28 {dimension_numbers = #tpu.dot_dimension_numbers<[2], [1], [1], [2], [0, 0, 0, 1, 1, 2], [0], [0]>} : vector<2x8x8xf32>, vector<2x8x16xf32>, vector<2x8x16xf32> -> vector<2x8x16xf32>
    "tpu.trace_stop"() : () -> ()
    %64 = vector.extract_strided_slice %45 {offsets = [0, 0, 16], sizes = [2, 8, 16], strides = [1, 1, 1]} : vector<2x8x96xf32> to vector<2x8x16xf32>
    %65 = vector.extract_strided_slice %45 {offsets = [0, 0, 48], sizes = [2, 8, 16], strides = [1, 1, 1]} : vector<2x8x96xf32> to vector<2x8x16xf32>
    %66 = vector.extract_strided_slice %45 {offsets = [0, 0, 80], sizes = [2, 8, 16], strides = [1, 1, 1]} : vector<2x8x96xf32> to vector<2x8x16xf32>
    "tpu.trace_start"() <{level = 10 : i32, message = "bqd,bkd->bqk"}> : () -> ()
    %cst_29 = arith.constant dense<0.000000e+00> : vector<2x8x8xf32>
    %67 = tpu.matmul %64, %65, %cst_29 {dimension_numbers = #tpu.dot_dimension_numbers<[2], [2], [1], [1], [0, 0, 0, 1, 1, 1], [0], [0]>} : vector<2x8x16xf32>, vector<2x8x16xf32>, vector<2x8x8xf32> -> vector<2x8x8xf32>
    "tpu.trace_stop"() : () -> ()
    %cst_30 = arith.constant 2.500000e-01 : f32
    %68 = vector.broadcast %cst_30 : f32 to vector<2x8x8xf32>
    %69 = arith.mulf %67, %68 : vector<2x8x8xf32>
    %70 = vector.broadcast %5 : vector<2x1x8xf32> to vector<2x8x8xf32>
    %71 = arith.addf %69, %70 : vector<2x8x8xf32>
    %cst_31 = arith.constant dense<0xFF800000> : vector<2x8xf32>
    %72 = vector.multi_reduction <maximumf>, %71, %cst_31 [2] : vector<2x8x8xf32> to vector<2x8xf32>
    %73 = vector.shape_cast %72 : vector<2x8xf32> to vector<2x8x1xf32>
    %74 = vector.broadcast %73 : vector<2x8x1xf32> to vector<2x8x8xf32>
    %75 = arith.subf %71, %74 : vector<2x8x8xf32>
    %76 = math.exp %75 : vector<2x8x8xf32>
    %cst_32 = arith.constant dense<0.000000e+00> : vector<2x8xf32>
    %77 = vector.multi_reduction <add>, %76, %cst_32 [2] : vector<2x8x8xf32> to vector<2x8xf32>
    %78 = vector.shape_cast %77 : vector<2x8xf32> to vector<2x8x1xf32>
    %79 = vector.broadcast %78 : vector<2x8x1xf32> to vector<2x8x8xf32>
    %80 = arith.divf %76, %79 : vector<2x8x8xf32>
    "tpu.trace_start"() <{level = 10 : i32, message = "bqk,bkd->bqd"}> : () -> ()
    %cst_33 = arith.constant dense<0.000000e+00> : vector<2x8x16xf32>
    %81 = tpu.matmul %80, %66, %cst_33 {dimension_numbers = #tpu.dot_dimension_numbers<[2], [1], [1], [2], [0, 0, 0, 1, 1, 2], [0], [0]>} : vector<2x8x8xf32>, vector<2x8x16xf32>, vector<2x8x16xf32> -> vector<2x8x16xf32>
    "tpu.trace_stop"() : () -> ()
    %82 = tpu.concatenate %63, %81 in 2 : vector<2x8x16xf32>, vector<2x8x16xf32> -> vector<2x8x32xf32>
    %83 = vector.shape_cast %82 : vector<2x8x32xf32> to vector<16x32xf32>
    %84 = vector.extract_strided_slice %32 {offsets = [0, 96], sizes = [32, 32], strides = [1, 1]} : vector<32x128xf32> to vector<32x32xf32>
    %cst_34 = arith.constant dense<0.000000e+00> : vector<16x32xf32>
    %85 = tpu.matmul %83, %84, %cst_34 {dimension_numbers = #tpu.dot_dimension_numbers<[1], [0], [0], [1], [0, 0, 1, 1], [], []>} : vector<16x32xf32>, vector<32x32xf32>, vector<16x32xf32> -> vector<16x32xf32>
    %86 = vector.extract_strided_slice %34 {offsets = [0, 96], sizes = [1, 32], strides = [1, 1]} : vector<1x128xf32> to vector<1x32xf32>
    %87 = vector.broadcast %86 : vector<1x32xf32> to vector<16x32xf32>
    %88 = arith.addf %85, %87 : vector<16x32xf32>
    %89 = arith.addf %30, %88 : vector<16x32xf32>
    %cst_35 = arith.constant dense<0.000000e+00> : vector<16xf32>
    %90 = vector.multi_reduction <add>, %89, %cst_35 [1] : vector<16x32xf32> to vector<16xf32>
    %91 = vector.shape_cast %90 : vector<16xf32> to vector<16x1xf32>
    %cst_36 = arith.constant 3.200000e+01 : f32
    %92 = vector.broadcast %cst_36 : f32 to vector<16x1xf32>
    %93 = arith.divf %91, %92 : vector<16x1xf32>
    %94 = vector.broadcast %93 : vector<16x1xf32> to vector<16x32xf32>
    %95 = arith.subf %89, %94 : vector<16x32xf32>
    %96 = arith.mulf %95, %95 : vector<16x32xf32>
    %cst_37 = arith.constant dense<0.000000e+00> : vector<16xf32>
    %97 = vector.multi_reduction <add>, %96, %cst_37 [1] : vector<16x32xf32> to vector<16xf32>
    %98 = vector.shape_cast %97 : vector<16xf32> to vector<16x1xf32>
    %cst_38 = arith.constant 3.200000e+01 : f32
    %99 = vector.broadcast %cst_38 : f32 to vector<16x1xf32>
    %100 = arith.divf %98, %99 : vector<16x1xf32>
    %101 = vector.broadcast %93 : vector<16x1xf32> to vector<16x32xf32>
    %102 = arith.subf %89, %101 : vector<16x32xf32>
    %cst_39 = arith.constant 9.99999996E-13 : f32
    %103 = vector.broadcast %cst_39 : f32 to vector<16x1xf32>
    %104 = arith.addf %100, %103 : vector<16x1xf32>
    %105 = math.rsqrt %104 : vector<16x1xf32>
    %106 = vector.broadcast %105 : vector<16x1xf32> to vector<16x32xf32>
    %107 = arith.mulf %102, %106 : vector<16x32xf32>
    %108 = vector.broadcast %35 : vector<1x32xf32> to vector<16x32xf32>
    %109 = arith.mulf %107, %108 : vector<16x32xf32>
    %110 = vector.broadcast %36 : vector<1x32xf32> to vector<16x32xf32>
    %111 = arith.addf %109, %110 : vector<16x32xf32>
    %c0_40 = arith.constant 0 : index
    %c0_41 = arith.constant 0 : index
    %c0_42 = arith.constant 0 : index
    %112 = vector.load %arg5[%c0_40, %c0_41, %c0_42] : memref<2x32x64xf32, #tpu.memory_space<vmem>>, vector<1x32x64xf32>
    %113 = vector.shape_cast %112 : vector<1x32x64xf32> to vector<32x64xf32>
    %cst_43 = arith.constant dense<0.000000e+00> : vector<16x64xf32>
    %114 = tpu.matmul %111, %113, %cst_43 {dimension_numbers = #tpu.dot_dimension_numbers<[1], [0], [0], [1], [0, 0, 1, 1], [], []>} : vector<16x32xf32>, vector<32x64xf32>, vector<16x64xf32> -> vector<16x64xf32>
    %c0_44 = arith.constant 0 : index
    %c0_45 = arith.constant 0 : index
    %c0_46 = arith.constant 0 : index
    %115 = vector.load %arg6[%c0_44, %c0_45, %c0_46] : memref<2x1x64xf32, #tpu.memory_space<vmem>>, vector<1x1x64xf32>
    %116 = vector.shape_cast %115 : vector<1x1x64xf32> to vector<1x64xf32>
    %117 = vector.broadcast %116 : vector<1x64xf32> to vector<16x64xf32>
    %118 = arith.addf %114, %117 : vector<16x64xf32>
    %cst_47 = arith.constant 5.000000e-01 : f32
    %119 = vector.broadcast %cst_47 : f32 to vector<16x64xf32>
    %120 = arith.mulf %119, %118 : vector<16x64xf32>
    %cst_48 = arith.constant 4.471500e-02 : f32
    %121 = vector.broadcast %cst_48 : f32 to vector<16x64xf32>
    %122 = arith.mulf %121, %118 : vector<16x64xf32>
    %123 = arith.mulf %122, %118 : vector<16x64xf32>
    %124 = arith.mulf %123, %118 : vector<16x64xf32>
    %125 = arith.addf %118, %124 : vector<16x64xf32>
    %cst_49 = arith.constant 0.797884583 : f32
    %126 = vector.broadcast %cst_49 : f32 to vector<16x64xf32>
    %127 = arith.mulf %126, %125 : vector<16x64xf32>
    %128 = math.tanh %127 : vector<16x64xf32>
    %cst_50 = arith.constant 1.000000e+00 : f32
    %129 = vector.broadcast %cst_50 : f32 to vector<16x64xf32>
    %130 = arith.addf %129, %128 : vector<16x64xf32>
    %131 = arith.mulf %120, %130 : vector<16x64xf32>
    %c0_51 = arith.constant 0 : index
    %c0_52 = arith.constant 0 : index
    %c0_53 = arith.constant 0 : index
    %132 = vector.load %arg7[%c0_51, %c0_52, %c0_53] : memref<2x64x32xf32, #tpu.memory_space<vmem>>, vector<1x64x32xf32>
    %133 = vector.shape_cast %132 : vector<1x64x32xf32> to vector<64x32xf32>
    %cst_54 = arith.constant dense<0.000000e+00> : vector<16x32xf32>
    %134 = tpu.matmul %131, %133, %cst_54 {dimension_numbers = #tpu.dot_dimension_numbers<[1], [0], [0], [1], [0, 0, 1, 1], [], []>} : vector<16x64xf32>, vector<64x32xf32>, vector<16x32xf32> -> vector<16x32xf32>
    %135 = vector.broadcast %37 : vector<1x32xf32> to vector<16x32xf32>
    %136 = arith.addf %134, %135 : vector<16x32xf32>
    %137 = arith.addf %111, %136 : vector<16x32xf32>
    %cst_55 = arith.constant dense<0.000000e+00> : vector<16xf32>
    %138 = vector.multi_reduction <add>, %137, %cst_55 [1] : vector<16x32xf32> to vector<16xf32>
    %139 = vector.shape_cast %138 : vector<16xf32> to vector<16x1xf32>
    %cst_56 = arith.constant 3.200000e+01 : f32
    %140 = vector.broadcast %cst_56 : f32 to vector<16x1xf32>
    %141 = arith.divf %139, %140 : vector<16x1xf32>
    %142 = vector.broadcast %141 : vector<16x1xf32> to vector<16x32xf32>
    %143 = arith.subf %137, %142 : vector<16x32xf32>
    %144 = arith.mulf %143, %143 : vector<16x32xf32>
    %cst_57 = arith.constant dense<0.000000e+00> : vector<16xf32>
    %145 = vector.multi_reduction <add>, %144, %cst_57 [1] : vector<16x32xf32> to vector<16xf32>
    %146 = vector.shape_cast %145 : vector<16xf32> to vector<16x1xf32>
    %cst_58 = arith.constant 3.200000e+01 : f32
    %147 = vector.broadcast %cst_58 : f32 to vector<16x1xf32>
    %148 = arith.divf %146, %147 : vector<16x1xf32>
    %149 = vector.broadcast %141 : vector<16x1xf32> to vector<16x32xf32>
    %150 = arith.subf %137, %149 : vector<16x32xf32>
    %cst_59 = arith.constant 9.99999996E-13 : f32
    %151 = vector.broadcast %cst_59 : f32 to vector<16x1xf32>
    %152 = arith.addf %148, %151 : vector<16x1xf32>
    %153 = math.rsqrt %152 : vector<16x1xf32>
    %154 = vector.broadcast %153 : vector<16x1xf32> to vector<16x32xf32>
    %155 = arith.mulf %150, %154 : vector<16x32xf32>
    %156 = vector.broadcast %38 : vector<1x32xf32> to vector<16x32xf32>
    %157 = arith.mulf %155, %156 : vector<16x32xf32>
    %158 = vector.broadcast %39 : vector<1x32xf32> to vector<16x32xf32>
    %159 = arith.addf %157, %158 : vector<16x32xf32>
    %c1_60 = arith.constant 1 : index
    %c0_61 = arith.constant 0 : index
    %c0_62 = arith.constant 0 : index
    %160 = vector.load %arg3[%c1_60, %c0_61, %c0_62] : memref<2x32x128xf32, #tpu.memory_space<vmem>>, vector<1x32x128xf32>
    %161 = vector.shape_cast %160 : vector<1x32x128xf32> to vector<32x128xf32>
    %c1_63 = arith.constant 1 : index
    %c0_64 = arith.constant 0 : index
    %c0_65 = arith.constant 0 : index
    %162 = vector.load %arg4[%c1_63, %c0_64, %c0_65] : memref<2x1x128xf32, #tpu.memory_space<vmem>>, vector<1x1x128xf32>
    %163 = vector.shape_cast %162 : vector<1x1x128xf32> to vector<1x128xf32>
    %c8 = arith.constant 8 : index
    %c0_66 = arith.constant 0 : index
    %164 = vector.load %arg2[%c8, %c0_66] : memref<13x32xf32, #tpu.memory_space<vmem>>, vector<1x32xf32>
    %c9 = arith.constant 9 : index
    %c0_67 = arith.constant 0 : index
    %165 = vector.load %arg2[%c9, %c0_67] : memref<13x32xf32, #tpu.memory_space<vmem>>, vector<1x32xf32>
    %c10 = arith.constant 10 : index
    %c0_68 = arith.constant 0 : index
    %166 = vector.load %arg2[%c10, %c0_68] : memref<13x32xf32, #tpu.memory_space<vmem>>, vector<1x32xf32>
    %c11 = arith.constant 11 : index
    %c0_69 = arith.constant 0 : index
    %167 = vector.load %arg2[%c11, %c0_69] : memref<13x32xf32, #tpu.memory_space<vmem>>, vector<1x32xf32>
    %c12 = arith.constant 12 : index
    %c0_70 = arith.constant 0 : index
    %168 = vector.load %arg2[%c12, %c0_70] : memref<13x32xf32, #tpu.memory_space<vmem>>, vector<1x32xf32>
    %169 = vector.extract_strided_slice %161 {offsets = [0, 0], sizes = [32, 96], strides = [1, 1]} : vector<32x128xf32> to vector<32x96xf32>
    %cst_71 = arith.constant dense<0.000000e+00> : vector<16x96xf32>
    %170 = tpu.matmul %159, %169, %cst_71 {dimension_numbers = #tpu.dot_dimension_numbers<[1], [0], [0], [1], [0, 0, 1, 1], [], []>} : vector<16x32xf32>, vector<32x96xf32>, vector<16x96xf32> -> vector<16x96xf32>
    %171 = vector.extract_strided_slice %163 {offsets = [0, 0], sizes = [1, 96], strides = [1, 1]} : vector<1x128xf32> to vector<1x96xf32>
    %172 = vector.broadcast %171 : vector<1x96xf32> to vector<16x96xf32>
    %173 = arith.addf %170, %172 : vector<16x96xf32>
    %174 = vector.shape_cast %173 : vector<16x96xf32> to vector<2x8x96xf32>
    %175 = vector.extract_strided_slice %174 {offsets = [0, 0, 0], sizes = [2, 8, 16], strides = [1, 1, 1]} : vector<2x8x96xf32> to vector<2x8x16xf32>
    %176 = vector.extract_strided_slice %174 {offsets = [0, 0, 32], sizes = [2, 8, 16], strides = [1, 1, 1]} : vector<2x8x96xf32> to vector<2x8x16xf32>
    %177 = vector.extract_strided_slice %174 {offsets = [0, 0, 64], sizes = [2, 8, 16], strides = [1, 1, 1]} : vector<2x8x96xf32> to vector<2x8x16xf32>
    "tpu.trace_start"() <{level = 10 : i32, message = "bqd,bkd->bqk"}> : () -> ()
    %cst_72 = arith.constant dense<0.000000e+00> : vector<2x8x8xf32>
    %178 = tpu.matmul %175, %176, %cst_72 {dimension_numbers = #tpu.dot_dimension_numbers<[2], [2], [1], [1], [0, 0, 0, 1, 1, 1], [0], [0]>} : vector<2x8x16xf32>, vector<2x8x16xf32>, vector<2x8x8xf32> -> vector<2x8x8xf32>
    "tpu.trace_stop"() : () -> ()
    %cst_73 = arith.constant 2.500000e-01 : f32
    %179 = vector.broadcast %cst_73 : f32 to vector<2x8x8xf32>
    %180 = arith.mulf %178, %179 : vector<2x8x8xf32>
    %181 = vector.broadcast %5 : vector<2x1x8xf32> to vector<2x8x8xf32>
    %182 = arith.addf %180, %181 : vector<2x8x8xf32>
    %cst_74 = arith.constant dense<0xFF800000> : vector<2x8xf32>
    %183 = vector.multi_reduction <maximumf>, %182, %cst_74 [2] : vector<2x8x8xf32> to vector<2x8xf32>
    %184 = vector.shape_cast %183 : vector<2x8xf32> to vector<2x8x1xf32>
    %185 = vector.broadcast %184 : vector<2x8x1xf32> to vector<2x8x8xf32>
    %186 = arith.subf %182, %185 : vector<2x8x8xf32>
    %187 = math.exp %186 : vector<2x8x8xf32>
    %cst_75 = arith.constant dense<0.000000e+00> : vector<2x8xf32>
    %188 = vector.multi_reduction <add>, %187, %cst_75 [2] : vector<2x8x8xf32> to vector<2x8xf32>
    %189 = vector.shape_cast %188 : vector<2x8xf32> to vector<2x8x1xf32>
    %190 = vector.broadcast %189 : vector<2x8x1xf32> to vector<2x8x8xf32>
    %191 = arith.divf %187, %190 : vector<2x8x8xf32>
    "tpu.trace_start"() <{level = 10 : i32, message = "bqk,bkd->bqd"}> : () -> ()
    %cst_76 = arith.constant dense<0.000000e+00> : vector<2x8x16xf32>
    %192 = tpu.matmul %191, %177, %cst_76 {dimension_numbers = #tpu.dot_dimension_numbers<[2], [1], [1], [2], [0, 0, 0, 1, 1, 2], [0], [0]>} : vector<2x8x8xf32>, vector<2x8x16xf32>, vector<2x8x16xf32> -> vector<2x8x16xf32>
    "tpu.trace_stop"() : () -> ()
    %193 = vector.extract_strided_slice %174 {offsets = [0, 0, 16], sizes = [2, 8, 16], strides = [1, 1, 1]} : vector<2x8x96xf32> to vector<2x8x16xf32>
    %194 = vector.extract_strided_slice %174 {offsets = [0, 0, 48], sizes = [2, 8, 16], strides = [1, 1, 1]} : vector<2x8x96xf32> to vector<2x8x16xf32>
    %195 = vector.extract_strided_slice %174 {offsets = [0, 0, 80], sizes = [2, 8, 16], strides = [1, 1, 1]} : vector<2x8x96xf32> to vector<2x8x16xf32>
    "tpu.trace_start"() <{level = 10 : i32, message = "bqd,bkd->bqk"}> : () -> ()
    %cst_77 = arith.constant dense<0.000000e+00> : vector<2x8x8xf32>
    %196 = tpu.matmul %193, %194, %cst_77 {dimension_numbers = #tpu.dot_dimension_numbers<[2], [2], [1], [1], [0, 0, 0, 1, 1, 1], [0], [0]>} : vector<2x8x16xf32>, vector<2x8x16xf32>, vector<2x8x8xf32> -> vector<2x8x8xf32>
    "tpu.trace_stop"() : () -> ()
    %cst_78 = arith.constant 2.500000e-01 : f32
    %197 = vector.broadcast %cst_78 : f32 to vector<2x8x8xf32>
    %198 = arith.mulf %196, %197 : vector<2x8x8xf32>
    %199 = vector.broadcast %5 : vector<2x1x8xf32> to vector<2x8x8xf32>
    %200 = arith.addf %198, %199 : vector<2x8x8xf32>
    %cst_79 = arith.constant dense<0xFF800000> : vector<2x8xf32>
    %201 = vector.multi_reduction <maximumf>, %200, %cst_79 [2] : vector<2x8x8xf32> to vector<2x8xf32>
    %202 = vector.shape_cast %201 : vector<2x8xf32> to vector<2x8x1xf32>
    %203 = vector.broadcast %202 : vector<2x8x1xf32> to vector<2x8x8xf32>
    %204 = arith.subf %200, %203 : vector<2x8x8xf32>
    %205 = math.exp %204 : vector<2x8x8xf32>
    %cst_80 = arith.constant dense<0.000000e+00> : vector<2x8xf32>
    %206 = vector.multi_reduction <add>, %205, %cst_80 [2] : vector<2x8x8xf32> to vector<2x8xf32>
    %207 = vector.shape_cast %206 : vector<2x8xf32> to vector<2x8x1xf32>
    %208 = vector.broadcast %207 : vector<2x8x1xf32> to vector<2x8x8xf32>
    %209 = arith.divf %205, %208 : vector<2x8x8xf32>
    "tpu.trace_start"() <{level = 10 : i32, message = "bqk,bkd->bqd"}> : () -> ()
    %cst_81 = arith.constant dense<0.000000e+00> : vector<2x8x16xf32>
    %210 = tpu.matmul %209, %195, %cst_81 {dimension_numbers = #tpu.dot_dimension_numbers<[2], [1], [1], [2], [0, 0, 0, 1, 1, 2], [0], [0]>} : vector<2x8x8xf32>, vector<2x8x16xf32>, vector<2x8x16xf32> -> vector<2x8x16xf32>
    "tpu.trace_stop"() : () -> ()
    %211 = tpu.concatenate %192, %210 in 2 : vector<2x8x16xf32>, vector<2x8x16xf32> -> vector<2x8x32xf32>
    %212 = vector.shape_cast %211 : vector<2x8x32xf32> to vector<16x32xf32>
    %213 = vector.extract_strided_slice %161 {offsets = [0, 96], sizes = [32, 32], strides = [1, 1]} : vector<32x128xf32> to vector<32x32xf32>
    %cst_82 = arith.constant dense<0.000000e+00> : vector<16x32xf32>
    %214 = tpu.matmul %212, %213, %cst_82 {dimension_numbers = #tpu.dot_dimension_numbers<[1], [0], [0], [1], [0, 0, 1, 1], [], []>} : vector<16x32xf32>, vector<32x32xf32>, vector<16x32xf32> -> vector<16x32xf32>
    %215 = vector.extract_strided_slice %163 {offsets = [0, 96], sizes = [1, 32], strides = [1, 1]} : vector<1x128xf32> to vector<1x32xf32>
    %216 = vector.broadcast %215 : vector<1x32xf32> to vector<16x32xf32>
    %217 = arith.addf %214, %216 : vector<16x32xf32>
    %218 = arith.addf %159, %217 : vector<16x32xf32>
    %cst_83 = arith.constant dense<0.000000e+00> : vector<16xf32>
    %219 = vector.multi_reduction <add>, %218, %cst_83 [1] : vector<16x32xf32> to vector<16xf32>
    %220 = vector.shape_cast %219 : vector<16xf32> to vector<16x1xf32>
    %cst_84 = arith.constant 3.200000e+01 : f32
    %221 = vector.broadcast %cst_84 : f32 to vector<16x1xf32>
    %222 = arith.divf %220, %221 : vector<16x1xf32>
    %223 = vector.broadcast %222 : vector<16x1xf32> to vector<16x32xf32>
    %224 = arith.subf %218, %223 : vector<16x32xf32>
    %225 = arith.mulf %224, %224 : vector<16x32xf32>
    %cst_85 = arith.constant dense<0.000000e+00> : vector<16xf32>
    %226 = vector.multi_reduction <add>, %225, %cst_85 [1] : vector<16x32xf32> to vector<16xf32>
    %227 = vector.shape_cast %226 : vector<16xf32> to vector<16x1xf32>
    %cst_86 = arith.constant 3.200000e+01 : f32
    %228 = vector.broadcast %cst_86 : f32 to vector<16x1xf32>
    %229 = arith.divf %227, %228 : vector<16x1xf32>
    %230 = vector.broadcast %222 : vector<16x1xf32> to vector<16x32xf32>
    %231 = arith.subf %218, %230 : vector<16x32xf32>
    %cst_87 = arith.constant 9.99999996E-13 : f32
    %232 = vector.broadcast %cst_87 : f32 to vector<16x1xf32>
    %233 = arith.addf %229, %232 : vector<16x1xf32>
    %234 = math.rsqrt %233 : vector<16x1xf32>
    %235 = vector.broadcast %234 : vector<16x1xf32> to vector<16x32xf32>
    %236 = arith.mulf %231, %235 : vector<16x32xf32>
    %237 = vector.broadcast %164 : vector<1x32xf32> to vector<16x32xf32>
    %238 = arith.mulf %236, %237 : vector<16x32xf32>
    %239 = vector.broadcast %165 : vector<1x32xf32> to vector<16x32xf32>
    %240 = arith.addf %238, %239 : vector<16x32xf32>
    %c1_88 = arith.constant 1 : index
    %c0_89 = arith.constant 0 : index
    %c0_90 = arith.constant 0 : index
    %241 = vector.load %arg5[%c1_88, %c0_89, %c0_90] : memref<2x32x64xf32, #tpu.memory_space<vmem>>, vector<1x32x64xf32>
    %242 = vector.shape_cast %241 : vector<1x32x64xf32> to vector<32x64xf32>
    %cst_91 = arith.constant dense<0.000000e+00> : vector<16x64xf32>
    %243 = tpu.matmul %240, %242, %cst_91 {dimension_numbers = #tpu.dot_dimension_numbers<[1], [0], [0], [1], [0, 0, 1, 1], [], []>} : vector<16x32xf32>, vector<32x64xf32>, vector<16x64xf32> -> vector<16x64xf32>
    %c1_92 = arith.constant 1 : index
    %c0_93 = arith.constant 0 : index
    %c0_94 = arith.constant 0 : index
    %244 = vector.load %arg6[%c1_92, %c0_93, %c0_94] : memref<2x1x64xf32, #tpu.memory_space<vmem>>, vector<1x1x64xf32>
    %245 = vector.shape_cast %244 : vector<1x1x64xf32> to vector<1x64xf32>
    %246 = vector.broadcast %245 : vector<1x64xf32> to vector<16x64xf32>
    %247 = arith.addf %243, %246 : vector<16x64xf32>
    %cst_95 = arith.constant 5.000000e-01 : f32
    %248 = vector.broadcast %cst_95 : f32 to vector<16x64xf32>
    %249 = arith.mulf %248, %247 : vector<16x64xf32>
    %cst_96 = arith.constant 4.471500e-02 : f32
    %250 = vector.broadcast %cst_96 : f32 to vector<16x64xf32>
    %251 = arith.mulf %250, %247 : vector<16x64xf32>
    %252 = arith.mulf %251, %247 : vector<16x64xf32>
    %253 = arith.mulf %252, %247 : vector<16x64xf32>
    %254 = arith.addf %247, %253 : vector<16x64xf32>
    %cst_97 = arith.constant 0.797884583 : f32
    %255 = vector.broadcast %cst_97 : f32 to vector<16x64xf32>
    %256 = arith.mulf %255, %254 : vector<16x64xf32>
    %257 = math.tanh %256 : vector<16x64xf32>
    %cst_98 = arith.constant 1.000000e+00 : f32
    %258 = vector.broadcast %cst_98 : f32 to vector<16x64xf32>
    %259 = arith.addf %258, %257 : vector<16x64xf32>
    %260 = arith.mulf %249, %259 : vector<16x64xf32>
    %c1_99 = arith.constant 1 : index
    %c0_100 = arith.constant 0 : index
    %c0_101 = arith.constant 0 : index
    %261 = vector.load %arg7[%c1_99, %c0_100, %c0_101] : memref<2x64x32xf32, #tpu.memory_space<vmem>>, vector<1x64x32xf32>
    %262 = vector.shape_cast %261 : vector<1x64x32xf32> to vector<64x32xf32>
    %cst_102 = arith.constant dense<0.000000e+00> : vector<16x32xf32>
    %263 = tpu.matmul %260, %262, %cst_102 {dimension_numbers = #tpu.dot_dimension_numbers<[1], [0], [0], [1], [0, 0, 1, 1], [], []>} : vector<16x64xf32>, vector<64x32xf32>, vector<16x32xf32> -> vector<16x32xf32>
    %264 = vector.broadcast %166 : vector<1x32xf32> to vector<16x32xf32>
    %265 = arith.addf %263, %264 : vector<16x32xf32>
    %266 = arith.addf %240, %265 : vector<16x32xf32>
    %cst_103 = arith.constant dense<0.000000e+00> : vector<16xf32>
    %267 = vector.multi_reduction <add>, %266, %cst_103 [1] : vector<16x32xf32> to vector<16xf32>
    %268 = vector.shape_cast %267 : vector<16xf32> to vector<16x1xf32>
    %cst_104 = arith.constant 3.200000e+01 : f32
    %269 = vector.broadcast %cst_104 : f32 to vector<16x1xf32>
    %270 = arith.divf %268, %269 : vector<16x1xf32>
    %271 = vector.broadcast %270 : vector<16x1xf32> to vector<16x32xf32>
    %272 = arith.subf %266, %271 : vector<16x32xf32>
    %273 = arith.mulf %272, %272 : vector<16x32xf32>
    %cst_105 = arith.constant dense<0.000000e+00> : vector<16xf32>
    %274 = vector.multi_reduction <add>, %273, %cst_105 [1] : vector<16x32xf32> to vector<16xf32>
    %275 = vector.shape_cast %274 : vector<16xf32> to vector<16x1xf32>
    %cst_106 = arith.constant 3.200000e+01 : f32
    %276 = vector.broadcast %cst_106 : f32 to vector<16x1xf32>
    %277 = arith.divf %275, %276 : vector<16x1xf32>
    %278 = vector.broadcast %270 : vector<16x1xf32> to vector<16x32xf32>
    %279 = arith.subf %266, %278 : vector<16x32xf32>
    %cst_107 = arith.constant 9.99999996E-13 : f32
    %280 = vector.broadcast %cst_107 : f32 to vector<16x1xf32>
    %281 = arith.addf %277, %280 : vector<16x1xf32>
    %282 = math.rsqrt %281 : vector<16x1xf32>
    %283 = vector.broadcast %282 : vector<16x1xf32> to vector<16x32xf32>
    %284 = arith.mulf %279, %283 : vector<16x32xf32>
    %285 = vector.broadcast %167 : vector<1x32xf32> to vector<16x32xf32>
    %286 = arith.mulf %284, %285 : vector<16x32xf32>
    %287 = vector.broadcast %168 : vector<1x32xf32> to vector<16x32xf32>
    %288 = arith.addf %286, %287 : vector<16x32xf32>
    %289 = vector.extract_strided_slice %288 {offsets = [0, 0], sizes = [1, 32], strides = [1, 1]} : vector<16x32xf32> to vector<1x32xf32>
    %290 = vector.extract_strided_slice %288 {offsets = [8, 0], sizes = [1, 32], strides = [1, 1]} : vector<16x32xf32> to vector<1x32xf32>
    %291 = tpu.concatenate %289, %290 in 0 : vector<1x32xf32>, vector<1x32xf32> -> vector<2x32xf32>
    %c0_108 = arith.constant 0 : index
    %c0_109 = arith.constant 0 : index
    %292 = vector.load %arg8[%c0_108, %c0_109] : memref<32x32xf32, #tpu.memory_space<vmem>>, vector<32x32xf32>
    %cst_110 = arith.constant dense<0.000000e+00> : vector<2x32xf32>
    %293 = tpu.matmul %291, %292, %cst_110 {dimension_numbers = #tpu.dot_dimension_numbers<[1], [0], [0], [1], [0, 0, 1, 1], [], []>} : vector<2x32xf32>, vector<32x32xf32>, vector<2x32xf32> -> vector<2x32xf32>
    %c2 = arith.constant 2 : index
    %c0_111 = arith.constant 0 : index
    %294 = vector.load %arg2[%c2, %c0_111] : memref<13x32xf32, #tpu.memory_space<vmem>>, vector<1x32xf32>
    %295 = vector.broadcast %294 : vector<1x32xf32> to vector<2x32xf32>
    %296 = arith.addf %293, %295 : vector<2x32xf32>
    %297 = math.tanh %296 : vector<2x32xf32>
    %c0_112 = arith.constant 0 : index
    %c0_113 = arith.constant 0 : index
    %298 = vector.load %arg9[%c0_112, %c0_113] : memref<2x32xf32, #tpu.memory_space<vmem>>, vector<2x32xf32>
    tpu.vector_store %arg9[%c0_112, %c0_113], %297 {strides = array<i32>} : memref<2x32xf32, #tpu.memory_space<vmem>>, vector<2x32xf32>,
    return
  }
}

</mosaic_0001>

<llo_original>
// kernel: bert_forward.1
$region0: #{bert_forward.1}
  #allocation0 [shape = 'u32[]', space=smem, size = 0x4, offset = 0x4, fixed_abs, tag = 'smem constant byte address 0x4 - core index']
  #allocation1 [shape = 'u32[72,128]{1,0:T(1,128)}', space=vmem, size = 0x9000, scoped, tag = 'internal scratch']
  %s0 = inlined_call_operand.vmem [shape: f32[16,32], index: 0, kind: input, shape index: {}]
  %s1 = inlined_call_operand.vmem [shape: f32[2,8], index: 1, kind: input, shape index: {}]
  %s2 = inlined_call_operand.vmem [shape: f32[13,32], index: 2, kind: input, shape index: {}]
  %s3 = inlined_call_operand.vmem [shape: f32[2,32,128], index: 3, kind: input, shape index: {}]
  %s4 = inlined_call_operand.vmem [shape: f32[2,1,128], index: 4, kind: input, shape index: {}]
  %s5 = inlined_call_operand.vmem [shape: f32[2,32,64], index: 5, kind: input, shape index: {}]
  %s6 = inlined_call_operand.vmem [shape: f32[2,1,64], index: 6, kind: input, shape index: {}]
  %s7 = inlined_call_operand.vmem [shape: f32[2,64,32], index: 7, kind: input, shape index: {}]
  %s8 = inlined_call_operand.vmem [shape: f32[32,32], index: 8, kind: input, shape index: {}]
  %s9 = inlined_call_operand.hbm [shape: f32[2,32], index: 9, kind: output, shape index: {}]
  %s10 = sld [smem:[#allocation0]]
  $region46: #{bert_forward.1} parent=0
    _
  %s12 = ssub.s32 1, %s10
  %s13 = scalar_select 0, %s12, %s10
  $region1: #{bert_forward.1} parent=0
    #allocation2 [shape = 'u8[1024]{0}', space=vmem, size = 0x400, scoped, tag = 'output window, operand 0, single buffered']
    #allocation3 [shape = 's32[1]{0}', space=sflag, size = 0x4, scoped, tag = 'scoped memory for bert_forward.1']
    %14 = vsyncpa [#allocation3], 0
    // Predicated region
    $region2: #{bert_forward.1} parent=1 // pred_check
      _
    $region3: #{bert_forward.1} parent=1 // pred_check_branch
      %16 = sbr.rel (0) target = $region5
    $region4: #{bert_forward.1} parent=1 // pred_region
      _
    $region5: #{bert_forward.1} parent=1 // pred_fallthru
      _
    // Predicated region
    $region6: #{bert_forward.1} parent=1 // pred_check
      _
    $region7: #{bert_forward.1} parent=1 // pred_check_branch
      %18 = sbr.rel (0) target = $region9
    $region8: #{bert_forward.1} parent=1 // pred_region
      _
    $region9: #{bert_forward.1} parent=1 // pred_fallthru
      _
    // Predicated region
    $region10: #{bert_forward.1} parent=1 // pred_check
      _
    $region11: #{bert_forward.1} parent=1 // pred_check_branch
      %20 = sbr.rel (0) target = $region13
    $region12: #{bert_forward.1} parent=1 // pred_region
      _
    $region13: #{bert_forward.1} parent=1 // pred_fallthru
      _
    // Predicated region
    $region14: #{bert_forward.1} parent=1 // pred_check
      _
    $region15: #{bert_forward.1} parent=1 // pred_check_branch
      %22 = sbr.rel (0) target = $region17
    $region16: #{bert_forward.1} parent=1 // pred_region
      _
    $region17: #{bert_forward.1} parent=1 // pred_fallthru
      _
    // Predicated region
    $region18: #{bert_forward.1} parent=1 // pred_check
      _
    $region19: #{bert_forward.1} parent=1 // pred_check_branch
      %24 = sbr.rel (0) target = $region21
    $region20: #{bert_forward.1} parent=1 // pred_region
      _
    $region21: #{bert_forward.1} parent=1 // pred_fallthru
      _
    // Predicated region
    $region22: #{bert_forward.1} parent=1 // pred_check
      _
    $region23: #{bert_forward.1} parent=1 // pred_check_branch
      %26 = sbr.rel (0) target = $region25
    $region24: #{bert_forward.1} parent=1 // pred_region
      _
    $region25: #{bert_forward.1} parent=1 // pred_fallthru
      _
    // Predicated region
    $region26: #{bert_forward.1} parent=1 // pred_check
      _
    $region27: #{bert_forward.1} parent=1 // pred_check_branch
      %28 = sbr.rel (0) target = $region29
    $region28: #{bert_forward.1} parent=1 // pred_region
      _
    $region29: #{bert_forward.1} parent=1 // pred_fallthru
      _
    // Predicated region
    $region30: #{bert_forward.1} parent=1 // pred_check
      _
    $region31: #{bert_forward.1} parent=1 // pred_check_branch
      %30 = sbr.rel (0) target = $region33
    $region32: #{bert_forward.1} parent=1 // pred_region
      _
    $region33: #{bert_forward.1} parent=1 // pred_fallthru
      _
    // Predicated region
    $region34: #{bert_forward.1} parent=1 // pred_check
      _
    $region35: #{bert_forward.1} parent=1 // pred_check_branch
      %32 = sbr.rel (0) target = $region37
    $region36: #{bert_forward.1} parent=1 // pred_region
      _
    $region37: #{bert_forward.1} parent=1 // pred_fallthru
      _
    %v33 = vld [vmem:[%s1] sm:$0x3]
    %v34 = vsub.f32 1.0, %v33
    %v35 = vmul.f32 %v34, -10000.0
    %v37 = vrot.slane %v35, 1
    %v38 = vld [vmem:[%s0] sm:$0xff]
    %v39 = vld [vmem:[%s0 + $0x8] sm:$0xff]
    %v40 = vld [vmem:[%s2] sm:$0x1]
    %v41 = vld [vmem:[%s2 + $0x1] sm:$0x1]
    %vm42 = vcmask 261120
    %v43 = vsel %vm42, %v38, 0.0
    %44 = vadd.xlane.f32.xlu0 %v43
    %v45 = vpop.xlane.xlu0 %44
    %v46 = vsel %vm42, %v39, 0.0
    %47 = vadd.xlane.f32.xlu0 %v46
    %v48 = vpop.xlane.xlu0 %47
    %v49 = vrcp.pop 32.0
    %v50 = vmul.f32 32.0, %v49
    %v51 = vsub.f32 1.0, %v50
    %v52 = vmul.f32 %v49, %v51
    %v53 = vadd.f32 %v49, %v52
    %vm54 = vweird.f32 %v49
    %v55 = vsel %vm54, %v49, %v53
    %v56 = vmul.f32 %v45, %v55
    %v57 = vmul.f32 %v48, %v55
    %v58 = vsub.f32 %v38, %v56
    %v59 = vsub.f32 %v39, %v57
    %v60 = vmul.f32 %v58, %v58
    %v61 = vmul.f32 %v59, %v59
    %v62 = vsel %vm42, %v60, 0.0
    %63 = vadd.xlane.f32.xlu0 %v62
    %v64 = vpop.xlane.xlu0 %63
    %v65 = vsel %vm42, %v61, 0.0
    %66 = vadd.xlane.f32.xlu0 %v65
    %v67 = vpop.xlane.xlu0 %66
    %v68 = vmul.f32 %v64, %v55
    %v69 = vmul.f32 %v67, %v55
    %v70 = vadd.f32 %v68, 1e-12
    %v71 = vadd.f32 %v69, 1e-12
    %v72 = vrsqrt.pop %v70
    %v73 = vmul.f32 %v72, %v70
    %v74 = vmul.f32 %v73, %v72
    %v75 = vmul.f32 0.5, %v74
    %v76 = vsub.f32 1.5, %v75
    %v77 = vmul.f32 %v72, %v76
    %vm78 = vweird.f32 %v70
    %vm79 = vweird.f32 %v72
    %vm80 = vmor %vm78, %vm79
    %v81 = vsel %vm80, %v72, %v77
    %v82 = vrsqrt.pop %v71
    %v83 = vmul.f32 %v82, %v71
    %v84 = vmul.f32 %v83, %v82
    %v85 = vmul.f32 0.5, %v84
    %v86 = vsub.f32 1.5, %v85
    %v87 = vmul.f32 %v82, %v86
    %vm88 = vweird.f32 %v71
    %vm89 = vweird.f32 %v82
    %vm90 = vmor %vm88, %vm89
    %v91 = vsel %vm90, %v82, %v87
    %v92 = vmul.f32 %v58, %v81
    %v93 = vmul.f32 %v59, %v91
    %v94 = vperm.slane %v40, 0
    %v95 = vmul.f32 %v92, %v94
    %v96 = vmul.f32 %v93, %v94
    %v97 = vperm.slane %v41, 0
    %v98 = vadd.f32 %v95, %v97
    %v99 = vadd.f32 %v96, %v97
    %v100 = vld [vmem:[%s3] sm:$0xff]
    %v101 = vld [vmem:[%s3 + $0x8] sm:$0xff]
    %v102 = vld [vmem:[%s3 + $0x10] sm:$0xff]
    %v103 = vld [vmem:[%s3 + $0x18] sm:$0xff]
    %v104 = vld [vmem:[%s4] sm:$0x1]
    %v105 = vld [vmem:[%s2 + $0x3] sm:$0x1]
    %v106 = vld [vmem:[%s2 + $0x4] sm:$0x1]
    %v107 = vld [vmem:[%s2 + $0x5] sm:$0x1]
    %v108 = vld [vmem:[%s2 + $0x6] sm:$0x1]
    %v109 = vld [vmem:[%s2 + $0x7] sm:$0x1]
    %v111 = vperm.slane %v104, 0
    %v114 = vsel %vm42, %v98, 0
    %v117 = vsel %vm42, %v99, 0
    %119 = vmatpush.msra.mxu0 0.0
    %120 = vmatpush.msra.mxu0 0.0
    %121 = vmatpush.msra.mxu0 0.0
    %122 = vmatpush.msra.mxu0 0.0
    %123 = vmatpush.msra.mxu0 0.0
    %124 = vmatpush.msra.mxu0 0.0
    %125 = vmatpush.msra.mxu0 0.0
    %126 = vmatpush.msra.mxu0 0.0
    %127 = vmatpush.msra.mxu0 0.0
    %128 = vmatpush.msra.mxu0 0.0
    %129 = vmatpush.msra.mxu0 0.0
    %130 = vmatpush.msra.mxu0 0.0
    %131 = vmatpush.msra.mxu0 %v103
    %132 = vmatpush.msra.mxu0 %v102
    %133 = vmatpush.msra.mxu0 %v101
    %134 = vmatpush.msra.mxu0 %v100
    %135 = vmatmul.f32.gmra.mxu0 %v114
    %v136 = vpop.f32.mrf.mxu0
    %v137 = vadd.f32 %v111, %v136
    %138 = vmatmul.f32.gmra.mxu0 %v117
    %v139 = vpop.f32.mrf.mxu0
    %v140 = vadd.f32 %v111, %v139
    %141 = vdwg.mxu0
    %143 = vrot.lane.b32.xlu0 %v137, 96
    %v144 = vpop.permute.xlu0 %143
    %vm145 = vcmask 130048
    %v146 = vsel %vm145, %v137, 0
    %v148 = vsel %vm145, %v144, 0
    %150 = vmatpush.xpose.msra.mxu0 0.0
    %151 = vmatpush.xpose.msra.mxu0 0.0
    %152 = vmatpush.xpose.msra.mxu0 0.0
    %153 = vmatpush.xpose.msra.mxu0 0.0
    %154 = vmatpush.xpose.msra.mxu0 0.0
    %155 = vmatpush.xpose.msra.mxu0 0.0
    %156 = vmatpush.xpose.msra.mxu0 0.0
    %157 = vmatpush.xpose.msra.mxu0 0.0
    %158 = vmatpush.xpose.msra.mxu0 0.0
    %159 = vmatpush.xpose.msra.mxu0 0.0
    %160 = vmatpush.xpose.msra.mxu0 0.0
    %161 = vmatpush.xpose.msra.mxu0 0.0
    %162 = vmatpush.xpose.msra.mxu0 0.0
    %163 = vmatpush.xpose.msra.mxu0 0.0
    %164 = vmatpush.xpose.msra.mxu0 0.0
    %165 = vmatpush.xpose.msra.mxu0 %v148
    %166 = vmatmul.f32.gmra.mxu0 %v146
    %v167 = vpop.f32.mrf.mxu0
    %v168 = vadd.f32 0.0, %v167
    %169 = vdwg.mxu0
    %171 = vrot.lane.b32.xlu0 %v140, 96
    %v172 = vpop.permute.xlu0 %171
    %v173 = vsel %vm145, %v140, 0
    %v175 = vsel %vm145, %v172, 0
    %177 = vmatpush.xpose.msra.mxu0 0.0
    %178 = vmatpush.xpose.msra.mxu0 0.0
    %179 = vmatpush.xpose.msra.mxu0 0.0
    %180 = vmatpush.xpose.msra.mxu0 0.0
    %181 = vmatpush.xpose.msra.mxu0 0.0
    %182 = vmatpush.xpose.msra.mxu0 0.0
    %183 = vmatpush.xpose.msra.mxu0 0.0
    %184 = vmatpush.xpose.msra.mxu0 0.0
    %185 = vmatpush.xpose.msra.mxu0 0.0
    %186 = vmatpush.xpose.msra.mxu0 0.0
    %187 = vmatpush.xpose.msra.mxu0 0.0
    %188 = vmatpush.xpose.msra.mxu0 0.0
    %189 = vmatpush.xpose.msra.mxu0 0.0
    %190 = vmatpush.xpose.msra.mxu0 0.0
    %191 = vmatpush.xpose.msra.mxu0 0.0
    %192 = vmatpush.xpose.msra.mxu0 %v175
    %193 = vmatmul.f32.gmra.mxu0 %v173
    %v194 = vpop.f32.mrf.mxu0
    %v195 = vadd.f32 0.0, %v194
    %196 = vdwg.mxu0
    %v197 = vmul.f32 %v168, 0.25
    %v198 = vmul.f32 %v195, 0.25
    %v199 = vperm.slane %v35, 0
    %v200 = vperm.slane %v37, 0
    %v203 = vadd.f32 %v197, %v199
    %v204 = vadd.f32 %v198, %v200
    %vm205 = vcmask 64512
    %v206 = vsel %vm205, %v203, -inf
    %207 = vmax.xlane.f32.xlu0 %v206
    %v208 = vpop.xlane.xlu0 %207
    %v209 = vsel %vm205, %v204, -inf
    %210 = vmax.xlane.f32.xlu0 %v209
    %v211 = vpop.xlane.xlu0 %210
    %v212 = vsub.f32 %v203, %v208
    %v213 = vsub.f32 %v204, %v211
    %v214 = vmul.f32 %v212, 1.442695
    %v215 = vpow.pop %v214
    %v216 = vmul.f32 %v213, 1.442695
    %v217 = vpow.pop %v216
    %v218 = vsel %vm205, %v215, 0.0
    %219 = vadd.xlane.f32.xlu0 %v218
    %v220 = vpop.xlane.xlu0 %219
    %v221 = vsel %vm205, %v217, 0.0
    %222 = vadd.xlane.f32.xlu0 %v221
    %v223 = vpop.xlane.xlu0 %222
    %v224 = vrcp.pop %v220
    %v225 = vmul.f32 %v220, %v224
    %v226 = vsub.f32 1.0, %v225
    %v227 = vmul.f32 %v224, %v226
    %v228 = vadd.f32 %v224, %v227
    %vm229 = vweird.f32 %v220
    %vm230 = vweird.f32 %v224
    %vm231 = vmor %vm229, %vm230
    %v232 = vsel %vm231, %v224, %v228
    %v233 = vand.u32 2147483647, %v220
    %vm234 = vcmp.eq.f32.partialorder %v233, 8.507059e+37
    %v235 = vand.u32 %v220, 2147483648
    %v236 = vor.u32 1.1754944e-38, %v235
    %v237 = vsel %vm234, %v236, %v232
    %v238 = vmul.f32 %v215, %v237
    %v239 = vrcp.pop %v223
    %v240 = vmul.f32 %v223, %v239
    %v241 = vsub.f32 1.0, %v240
    %v242 = vmul.f32 %v239, %v241
    %v243 = vadd.f32 %v239, %v242
    %vm244 = vweird.f32 %v223
    %vm245 = vweird.f32 %v239
    %vm246 = vmor %vm244, %vm245
    %v247 = vsel %vm246, %v239, %v243
    %v248 = vand.u32 2147483647, %v223
    %vm249 = vcmp.eq.f32.partialorder %v248, 8.507059e+37
    %v250 = vand.u32 %v223, 2147483648
    %v251 = vor.u32 1.1754944e-38, %v250
    %v252 = vsel %vm249, %v251, %v247
    %v253 = vmul.f32 %v217, %v252
    %254 = vrot.lane.b32.xlu0 %v137, 64
    %v255 = vpop.permute.xlu0 %254
    %v258 = vsel %vm205, %v238, 0
    %260 = vmatpush.msra.mxu0 0.0
    %261 = vmatpush.msra.mxu0 0.0
    %262 = vmatpush.msra.mxu0 0.0
    %263 = vmatpush.msra.mxu0 0.0
    %264 = vmatpush.msra.mxu0 0.0
    %265 = vmatpush.msra.mxu0 0.0
    %266 = vmatpush.msra.mxu0 0.0
    %267 = vmatpush.msra.mxu0 0.0
    %268 = vmatpush.msra.mxu0 0.0
    %269 = vmatpush.msra.mxu0 0.0
    %270 = vmatpush.msra.mxu0 0.0
    %271 = vmatpush.msra.mxu0 0.0
    %272 = vmatpush.msra.mxu0 0.0
    %273 = vmatpush.msra.mxu0 0.0
    %274 = vmatpush.msra.mxu0 0.0
    %275 = vmatpush.msra.mxu0 %v255
    %276 = vmatmul.f32.gmra.mxu0 %v258
    %v277 = vpop.f32.mrf.mxu0
    %v278 = vadd.f32 0.0, %v277
    %279 = vdwg.mxu0
    %280 = vrot.lane.b32.xlu0 %v140, 64
    %v281 = vpop.permute.xlu0 %280
    %v284 = vsel %vm205, %v253, 0
    %286 = vmatpush.msra.mxu0 0.0
    %287 = vmatpush.msra.mxu0 0.0
    %288 = vmatpush.msra.mxu0 0.0
    %289 = vmatpush.msra.mxu0 0.0
    %290 = vmatpush.msra.mxu0 0.0
    %291 = vmatpush.msra.mxu0 0.0
    %292 = vmatpush.msra.mxu0 0.0
    %293 = vmatpush.msra.mxu0 0.0
    %294 = vmatpush.msra.mxu0 0.0
    %295 = vmatpush.msra.mxu0 0.0
    %296 = vmatpush.msra.mxu0 0.0
    %297 = vmatpush.msra.mxu0 0.0
    %298 = vmatpush.msra.mxu0 0.0
    %299 = vmatpush.msra.mxu0 0.0
    %300 = vmatpush.msra.mxu0 0.0
    %301 = vmatpush.msra.mxu0 %v281
    %302 = vmatmul.f32.gmra.mxu0 %v284
    %v303 = vpop.f32.mrf.mxu0
    %v304 = vadd.f32 0.0, %v303
    %305 = vdwg.mxu0
    %306 = vrot.lane.b32.xlu0 %v137, 112
    %v307 = vpop.permute.xlu0 %306
    %308 = vrot.lane.b32.xlu0 %v137, 80
    %v309 = vpop.permute.xlu0 %308
    %v310 = vsel %vm145, %v307, 0
    %v312 = vsel %vm145, %v309, 0
    %314 = vmatpush.xpose.msra.mxu0 0.0
    %315 = vmatpush.xpose.msra.mxu0 0.0
    %316 = vmatpush.xpose.msra.mxu0 0.0
    %317 = vmatpush.xpose.msra.mxu0 0.0
    %318 = vmatpush.xpose.msra.mxu0 0.0
    %319 = vmatpush.xpose.msra.mxu0 0.0
    %320 = vmatpush.xpose.msra.mxu0 0.0
    %321 = vmatpush.xpose.msra.mxu0 0.0
    %322 = vmatpush.xpose.msra.mxu0 0.0
    %323 = vmatpush.xpose.msra.mxu0 0.0
    %324 = vmatpush.xpose.msra.mxu0 0.0
    %325 = vmatpush.xpose.msra.mxu0 0.0
    %326 = vmatpush.xpose.msra.mxu0 0.0
    %327 = vmatpush.xpose.msra.mxu0 0.0
    %328 = vmatpush.xpose.msra.mxu0 0.0
    %329 = vmatpush.xpose.msra.mxu0 %v312
    %330 = vmatmul.f32.gmra.mxu0 %v310
    %v331 = vpop.f32.mrf.mxu0
    %v332 = vadd.f32 0.0, %v331
    %333 = vdwg.mxu0
    %334 = vrot.lane.b32.xlu0 %v140, 112
    %v335 = vpop.permute.xlu0 %334
    %336 = vrot.lane.b32.xlu0 %v140, 80
    %v337 = vpop.permute.xlu0 %336
    %v338 = vsel %vm145, %v335, 0
    %v340 = vsel %vm145, %v337, 0
    %342 = vmatpush.xpose.msra.mxu0 0.0
    %343 = vmatpush.xpose.msra.mxu0 0.0
    %344 = vmatpush.xpose.msra.mxu0 0.0
    %345 = vmatpush.xpose.msra.mxu0 0.0
    %346 = vmatpush.xpose.msra.mxu0 0.0
    %347 = vmatpush.xpose.msra.mxu0 0.0
    %348 = vmatpush.xpose.msra.mxu0 0.0
    %349 = vmatpush.xpose.msra.mxu0 0.0
    %350 = vmatpush.xpose.msra.mxu0 0.0
    %351 = vmatpush.xpose.msra.mxu0 0.0
    %352 = vmatpush.xpose.msra.mxu0 0.0
    %353 = vmatpush.xpose.msra.mxu0 0.0
    %354 = vmatpush.xpose.msra.mxu0 0.0
    %355 = vmatpush.xpose.msra.mxu0 0.0
    %356 = vmatpush.xpose.msra.mxu0 0.0
    %357 = vmatpush.xpose.msra.mxu0 %v340
    %358 = vmatmul.f32.gmra.mxu0 %v338
    %v359 = vpop.f32.mrf.mxu0
    %v360 = vadd.f32 0.0, %v359
    %361 = vdwg.mxu0
    %v362 = vmul.f32 %v332, 0.25
    %v363 = vmul.f32 %v360, 0.25
    %v364 = vadd.f32 %v362, %v199
    %v365 = vadd.f32 %v363, %v200
    %v366 = vsel %vm205, %v364, -inf
    %367 = vmax.xlane.f32.xlu0 %v366
    %v368 = vpop.xlane.xlu0 %367
    %v369 = vsel %vm205, %v365, -inf
    %370 = vmax.xlane.f32.xlu0 %v369
    %v371 = vpop.xlane.xlu0 %370
    %v372 = vsub.f32 %v364, %v368
    %v373 = vsub.f32 %v365, %v371
    %v374 = vmul.f32 %v372, 1.442695
    %v375 = vpow.pop %v374
    %v376 = vmul.f32 %v373, 1.442695
    %v377 = vpow.pop %v376
    %v378 = vsel %vm205, %v375, 0.0
    %379 = vadd.xlane.f32.xlu0 %v378
    %v380 = vpop.xlane.xlu0 %379
    %v381 = vsel %vm205, %v377, 0.0
    %382 = vadd.xlane.f32.xlu0 %v381
    %v383 = vpop.xlane.xlu0 %382
    %v384 = vrcp.pop %v380
    %v385 = vmul.f32 %v380, %v384
    %v386 = vsub.f32 1.0, %v385
    %v387 = vmul.f32 %v384, %v386
    %v388 = vadd.f32 %v384, %v387
    %vm389 = vweird.f32 %v380
    %vm390 = vweird.f32 %v384
    %vm391 = vmor %vm389, %vm390
    %v392 = vsel %vm391, %v384, %v388
    %v393 = vand.u32 2147483647, %v380
    %vm394 = vcmp.eq.f32.partialorder %v393, 8.507059e+37
    %v395 = vand.u32 %v380, 2147483648
    %v396 = vor.u32 1.1754944e-38, %v395
    %v397 = vsel %vm394, %v396, %v392
    %v398 = vmul.f32 %v375, %v397
    %v399 = vrcp.pop %v383
    %v400 = vmul.f32 %v383, %v399
    %v401 = vsub.f32 1.0, %v400
    %v402 = vmul.f32 %v399, %v401
    %v403 = vadd.f32 %v399, %v402
    %vm404 = vweird.f32 %v383
    %vm405 = vweird.f32 %v399
    %vm406 = vmor %vm404, %vm405
    %v407 = vsel %vm406, %v399, %v403
    %v408 = vand.u32 2147483647, %v383
    %vm409 = vcmp.eq.f32.partialorder %v408, 8.507059e+37
    %v410 = vand.u32 %v383, 2147483648
    %v411 = vor.u32 1.1754944e-38, %v410
    %v412 = vsel %vm409, %v411, %v407
    %v413 = vmul.f32 %v377, %v412
    %414 = vrot.lane.b32.xlu0 %v137, 48
    %v415 = vpop.permute.xlu0 %414
    %v418 = vsel %vm205, %v398, 0
    %420 = vmatpush.msra.mxu0 0.0
    %421 = vmatpush.msra.mxu0 0.0
    %422 = vmatpush.msra.mxu0 0.0
    %423 = vmatpush.msra.mxu0 0.0
    %424 = vmatpush.msra.mxu0 0.0
    %425 = vmatpush.msra.mxu0 0.0
    %426 = vmatpush.msra.mxu0 0.0
    %427 = vmatpush.msra.mxu0 0.0
    %428 = vmatpush.msra.mxu0 0.0
    %429 = vmatpush.msra.mxu0 0.0
    %430 = vmatpush.msra.mxu0 0.0
    %431 = vmatpush.msra.mxu0 0.0
    %432 = vmatpush.msra.mxu0 0.0
    %433 = vmatpush.msra.mxu0 0.0
    %434 = vmatpush.msra.mxu0 0.0
    %435 = vmatpush.msra.mxu0 %v415
    %436 = vmatmul.f32.gmra.mxu0 %v418
    %v437 = vpop.f32.mrf.mxu0
    %v438 = vadd.f32 0.0, %v437
    %439 = vdwg.mxu0
    %440 = vrot.lane.b32.xlu0 %v140, 48
    %v441 = vpop.permute.xlu0 %440
    %v444 = vsel %vm205, %v413, 0
    %446 = vmatpush.msra.mxu0 0.0
    %447 = vmatpush.msra.mxu0 0.0
    %448 = vmatpush.msra.mxu0 0.0
    %449 = vmatpush.msra.mxu0 0.0
    %450 = vmatpush.msra.mxu0 0.0
    %451 = vmatpush.msra.mxu0 0.0
    %452 = vmatpush.msra.mxu0 0.0
    %453 = vmatpush.msra.mxu0 0.0
    %454 = vmatpush.msra.mxu0 0.0
    %455 = vmatpush.msra.mxu0 0.0
    %456 = vmatpush.msra.mxu0 0.0
    %457 = vmatpush.msra.mxu0 0.0
    %458 = vmatpush.msra.mxu0 0.0
    %459 = vmatpush.msra.mxu0 0.0
    %460 = vmatpush.msra.mxu0 0.0
    %461 = vmatpush.msra.mxu0 %v441
    %462 = vmatmul.f32.gmra.mxu0 %v444
    %v463 = vpop.f32.mrf.mxu0
    %v464 = vadd.f32 0.0, %v463
    %465 = vdwg.mxu0
    %468 = vrot.lane.b32.xlu0 %v438, 16
    %v469 = vpop.permute.xlu0 %468
    %470 = vrot.lane.b32.xlu0 %v464, 16
    %v471 = vpop.permute.xlu0 %470
    %v474 = vsel %vm145, %v278, %v469
    %v475 = vsel %vm145, %v304, %v471
    %480 = vrot.lane.b32.xlu0 %v100, 32
    %v481 = vpop.permute.xlu0 %480
    %482 = vrot.lane.b32.xlu0 %v101, 32
    %v483 = vpop.permute.xlu0 %482
    %484 = vrot.lane.b32.xlu0 %v102, 32
    %v485 = vpop.permute.xlu0 %484
    %486 = vrot.lane.b32.xlu0 %v103, 32
    %v487 = vpop.permute.xlu0 %486
    %492 = vrot.lane.b32.xlu0 %v111, 32
    %v493 = vpop.permute.xlu0 %492
    %v496 = vsel %vm42, %v474, 0
    %v499 = vsel %vm42, %v475, 0
    %501 = vmatpush.msra.mxu0 0.0
    %502 = vmatpush.msra.mxu0 0.0
    %503 = vmatpush.msra.mxu0 0.0
    %504 = vmatpush.msra.mxu0 0.0
    %505 = vmatpush.msra.mxu0 0.0
    %506 = vmatpush.msra.mxu0 0.0
    %507 = vmatpush.msra.mxu0 0.0
    %508 = vmatpush.msra.mxu0 0.0
    %509 = vmatpush.msra.mxu0 0.0
    %510 = vmatpush.msra.mxu0 0.0
    %511 = vmatpush.msra.mxu0 0.0
    %512 = vmatpush.msra.mxu0 0.0
    %513 = vmatpush.msra.mxu0 %v487
    %514 = vmatpush.msra.mxu0 %v485
    %515 = vmatpush.msra.mxu0 %v483
    %516 = vmatpush.msra.mxu0 %v481
    %517 = vmatmul.f32.gmra.mxu0 %v496
    %v518 = vpop.f32.mrf.mxu0
    %v519 = vadd.f32 %v493, %v518
    %520 = vmatmul.f32.gmra.mxu0 %v499
    %v521 = vpop.f32.mrf.mxu0
    %v522 = vadd.f32 %v493, %v521
    %523 = vdwg.mxu0
    %v524 = vadd.f32 %v98, %v519
    %v525 = vadd.f32 %v99, %v522
    %v526 = vsel %vm42, %v524, 0.0
    %527 = vadd.xlane.f32.xlu0 %v526
    %v528 = vpop.xlane.xlu0 %527
    %v529 = vsel %vm42, %v525, 0.0
    %530 = vadd.xlane.f32.xlu0 %v529
    %v531 = vpop.xlane.xlu0 %530
    %v532 = vmul.f32 %v528, %v55
    %v533 = vmul.f32 %v531, %v55
    %v534 = vsub.f32 %v524, %v532
    %v535 = vsub.f32 %v525, %v533
    %v536 = vmul.f32 %v534, %v534
    %v537 = vmul.f32 %v535, %v535
    %v538 = vsel %vm42, %v536, 0.0
    %539 = vadd.xlane.f32.xlu0 %v538
    %v540 = vpop.xlane.xlu0 %539
    %v541 = vsel %vm42, %v537, 0.0
    %542 = vadd.xlane.f32.xlu0 %v541
    %v543 = vpop.xlane.xlu0 %542
    %v544 = vmul.f32 %v540, %v55
    %v545 = vmul.f32 %v543, %v55
    %v546 = vadd.f32 %v544, 1e-12
    %v547 = vadd.f32 %v545, 1e-12
    %v548 = vrsqrt.pop %v546
    %v549 = vmul.f32 %v548, %v546
    %v550 = vmul.f32 %v549, %v548
    %v551 = vmul.f32 0.5, %v550
    %v552 = vsub.f32 1.5, %v551
    %v553 = vmul.f32 %v548, %v552
    %vm554 = vweird.f32 %v546
    %vm555 = vweird.f32 %v548
    %vm556 = vmor %vm554, %vm555
    %v557 = vsel %vm556, %v548, %v553
    %v558 = vrsqrt.pop %v547
    %v559 = vmul.f32 %v558, %v547
    %v560 = vmul.f32 %v559, %v558
    %v561 = vmul.f32 0.5, %v560
    %v562 = vsub.f32 1.5, %v561
    %v563 = vmul.f32 %v558, %v562
    %vm564 = vweird.f32 %v547
    %vm565 = vweird.f32 %v558
    %vm566 = vmor %vm564, %vm565
    %v567 = vsel %vm566, %v558, %v563
    %v568 = vmul.f32 %v534, %v557
    %v569 = vmul.f32 %v535, %v567
    %v570 = vperm.slane %v105, 0
    %v571 = vmul.f32 %v568, %v570
    %v572 = vmul.f32 %v569, %v570
    %v573 = vperm.slane %v106, 0
    %v574 = vadd.f32 %v571, %v573
    %v575 = vadd.f32 %v572, %v573
    %v576 = vld [vmem:[%s5] sm:$0xff]
    %v577 = vld [vmem:[%s5 + $0x8] sm:$0xff]
    %v578 = vld [vmem:[%s5 + $0x10] sm:$0xff]
    %v579 = vld [vmem:[%s5 + $0x18] sm:$0xff]
    %v580 = vld [vmem:[%s6] sm:$0x1]
    %v582 = vperm.slane %v580, 0
    %v585 = vsel %vm42, %v574, 0
    %v588 = vsel %vm42, %v575, 0
    %590 = vmatpush.msra.mxu0 0.0
    %591 = vmatpush.msra.mxu0 0.0
    %592 = vmatpush.msra.mxu0 0.0
    %593 = vmatpush.msra.mxu0 0.0
    %594 = vmatpush.msra.mxu0 0.0
    %595 = vmatpush.msra.mxu0 0.0
    %596 = vmatpush.msra.mxu0 0.0
    %597 = vmatpush.msra.mxu0 0.0
    %598 = vmatpush.msra.mxu0 0.0
    %599 = vmatpush.msra.mxu0 0.0
    %600 = vmatpush.msra.mxu0 0.0
    %601 = vmatpush.msra.mxu0 0.0
    %602 = vmatpush.msra.mxu0 %v579
    %603 = vmatpush.msra.mxu0 %v578
    %604 = vmatpush.msra.mxu0 %v577
    %605 = vmatpush.msra.mxu0 %v576
    %606 = vmatmul.f32.gmra.mxu0 %v585
    %v607 = vpop.f32.mrf.mxu0
    %v608 = vadd.f32 %v582, %v607
    %609 = vmatmul.f32.gmra.mxu0 %v588
    %v610 = vpop.f32.mrf.mxu0
    %v611 = vadd.f32 %v582, %v610
    %612 = vdwg.mxu0
    %v613 = vmul.f32 %v608, 0.5
    %v614 = vmul.f32 %v611, 0.5
    %v615 = vmul.f32 %v608, 0.044715
    %v616 = vmul.f32 %v611, 0.044715
    %v617 = vmul.f32 %v615, %v608
    %v618 = vmul.f32 %v616, %v611
    %v619 = vmul.f32 %v617, %v608
    %v620 = vmul.f32 %v618, %v611
    %v621 = vadd.f32 %v608, %v619
    %v622 = vadd.f32 %v611, %v620
    %v623 = vmul.f32 %v621, 0.7978846
    %v624 = vmul.f32 %v622, 0.7978846
    %v625 = vtanh.pop %v623
    %v626 = vtanh.pop %v624
    %v627 = vadd.f32 %v625, 1.0
    %v628 = vadd.f32 %v626, 1.0
    %v629 = vmul.f32 %v613, %v627
    %v630 = vmul.f32 %v614, %v628
    %v631 = vld [vmem:[%s7] sm:$0xff]
    %v632 = vld [vmem:[%s7 + $0x8] sm:$0xff]
    %v633 = vld [vmem:[%s7 + $0x10] sm:$0xff]
    %v634 = vld [vmem:[%s7 + $0x18] sm:$0xff]
    %v635 = vld [vmem:[%s7 + $0x20] sm:$0xff]
    %v636 = vld [vmem:[%s7 + $0x28] sm:$0xff]
    %v637 = vld [vmem:[%s7 + $0x30] sm:$0xff]
    %v638 = vld [vmem:[%s7 + $0x38] sm:$0xff]
    %v639 = vperm.slane %v107, 0
    %vm640 = vcmask 523264
    %v642 = vsel %vm640, %v629, 0
    %v645 = vsel %vm640, %v630, 0
    %647 = vmatpush.msra.mxu0 0.0
    %648 = vmatpush.msra.mxu0 0.0
    %649 = vmatpush.msra.mxu0 0.0
    %650 = vmatpush.msra.mxu0 0.0
    %651 = vmatpush.msra.mxu0 0.0
    %652 = vmatpush.msra.mxu0 0.0
    %653 = vmatpush.msra.mxu0 0.0
    %654 = vmatpush.msra.mxu0 0.0
    %655 = vmatpush.msra.mxu0 %v638
    %656 = vmatpush.msra.mxu0 %v637
    %657 = vmatpush.msra.mxu0 %v636
    %658 = vmatpush.msra.mxu0 %v635
    %659 = vmatpush.msra.mxu0 %v634
    %660 = vmatpush.msra.mxu0 %v633
    %661 = vmatpush.msra.mxu0 %v632
    %662 = vmatpush.msra.mxu0 %v631
    %663 = vmatmul.f32.gmra.mxu0 %v642
    %v664 = vpop.f32.mrf.mxu0
    %v665 = vadd.f32 %v639, %v664
    %666 = vmatmul.f32.gmra.mxu0 %v645
    %v667 = vpop.f32.mrf.mxu0
    %v668 = vadd.f32 %v639, %v667
    %669 = vdwg.mxu0
    %v670 = vadd.f32 %v574, %v665
    %v671 = vadd.f32 %v575, %v668
    %v672 = vsel %vm42, %v670, 0.0
    %673 = vadd.xlane.f32.xlu0 %v672
    %v674 = vpop.xlane.xlu0 %673
    %v675 = vsel %vm42, %v671, 0.0
    %676 = vadd.xlane.f32.xlu0 %v675
    %v677 = vpop.xlane.xlu0 %676
    %v678 = vmul.f32 %v674, %v55
    %v679 = vmul.f32 %v677, %v55
    %v680 = vsub.f32 %v670, %v678
    %v681 = vsub.f32 %v671, %v679
    %v682 = vmul.f32 %v680, %v680
    %v683 = vmul.f32 %v681, %v681
    %v684 = vsel %vm42, %v682, 0.0
    %685 = vadd.xlane.f32.xlu0 %v684
    %v686 = vpop.xlane.xlu0 %685
    %v687 = vsel %vm42, %v683, 0.0
    %688 = vadd.xlane.f32.xlu0 %v687
    %v689 = vpop.xlane.xlu0 %688
    %v690 = vmul.f32 %v686, %v55
    %v691 = vmul.f32 %v689, %v55
    %v692 = vadd.f32 %v690, 1e-12
    %v693 = vadd.f32 %v691, 1e-12
    %v694 = vrsqrt.pop %v692
    %v695 = vmul.f32 %v694, %v692
    %v696 = vmul.f32 %v695, %v694
    %v697 = vmul.f32 0.5, %v696
    %v698 = vsub.f32 1.5, %v697
    %v699 = vmul.f32 %v694, %v698
    %vm700 = vweird.f32 %v692
    %vm701 = vweird.f32 %v694
    %vm702 = vmor %vm700, %vm701
    %v703 = vsel %vm702, %v694, %v699
    %v704 = vrsqrt.pop %v693
    %v705 = vmul.f32 %v704, %v693
    %v706 = vmul.f32 %v705, %v704
    %v707 = vmul.f32 0.5, %v706
    %v708 = vsub.f32 1.5, %v707
    %v709 = vmul.f32 %v704, %v708
    %vm710 = vweird.f32 %v693
    %vm711 = vweird.f32 %v704
    %vm712 = vmor %vm710, %vm711
    %v713 = vsel %vm712, %v704, %v709
    %v714 = vmul.f32 %v680, %v703
    %v715 = vmul.f32 %v681, %v713
    %v716 = vperm.slane %v108, 0
    %v717 = vmul.f32 %v714, %v716
    %v718 = vmul.f32 %v715, %v716
    %v719 = vperm.slane %v109, 0
    %v720 = vadd.f32 %v717, %v719
    %v721 = vadd.f32 %v718, %v719
    %s722 = scalar_lea.vmem %s3, 32
    %v723 = vld [vmem:[%s722] sm:$0xff]
    %v724 = vld [vmem:[%s722 + $0x8] sm:$0xff]
    %v725 = vld [vmem:[%s722 + $0x10] sm:$0xff]
    %v726 = vld [vmem:[%s722 + $0x18] sm:$0xff]
    %s727 = scalar_lea.vmem %s4, 1
    %v728 = vld [vmem:[%s727] sm:$0x1]
    %v729 = vld [vmem:[%s2 + $0x8] sm:$0x1]
    %v730 = vld [vmem:[%s2 + $0x9] sm:$0x1]
    %v731 = vld [vmem:[%s2 + $0xa] sm:$0x1]
    %v732 = vld [vmem:[%s2 + $0xb] sm:$0x1]
    %v733 = vld [vmem:[%s2 + $0xc] sm:$0x1]
    %v735 = vperm.slane %v728, 0
    %v738 = vsel %vm42, %v720, 0
    %v741 = vsel %vm42, %v721, 0
    %743 = vmatpush.msra.mxu0 0.0
    %744 = vmatpush.msra.mxu0 0.0
    %745 = vmatpush.msra.mxu0 0.0
    %746 = vmatpush.msra.mxu0 0.0
    %747 = vmatpush.msra.mxu0 0.0
    %748 = vmatpush.msra.mxu0 0.0
    %749 = vmatpush.msra.mxu0 0.0
    %750 = vmatpush.msra.mxu0 0.0
    %751 = vmatpush.msra.mxu0 0.0
    %752 = vmatpush.msra.mxu0 0.0
    %753 = vmatpush.msra.mxu0 0.0
    %754 = vmatpush.msra.mxu0 0.0
    %755 = vmatpush.msra.mxu0 %v726
    %756 = vmatpush.msra.mxu0 %v725
    %757 = vmatpush.msra.mxu0 %v724
    %758 = vmatpush.msra.mxu0 %v723
    %759 = vmatmul.f32.gmra.mxu0 %v738
    %v760 = vpop.f32.mrf.mxu0
    %v761 = vadd.f32 %v735, %v760
    %762 = vmatmul.f32.gmra.mxu0 %v741
    %v763 = vpop.f32.mrf.mxu0
    %v764 = vadd.f32 %v735, %v763
    %765 = vdwg.mxu0
    %767 = vrot.lane.b32.xlu0 %v761, 96
    %v768 = vpop.permute.xlu0 %767
    %v769 = vsel %vm145, %v761, 0
    %v771 = vsel %vm145, %v768, 0
    %773 = vmatpush.xpose.msra.mxu0 0.0
    %774 = vmatpush.xpose.msra.mxu0 0.0
    %775 = vmatpush.xpose.msra.mxu0 0.0
    %776 = vmatpush.xpose.msra.mxu0 0.0
    %777 = vmatpush.xpose.msra.mxu0 0.0
    %778 = vmatpush.xpose.msra.mxu0 0.0
    %779 = vmatpush.xpose.msra.mxu0 0.0
    %780 = vmatpush.xpose.msra.mxu0 0.0
    %781 = vmatpush.xpose.msra.mxu0 0.0
    %782 = vmatpush.xpose.msra.mxu0 0.0
    %783 = vmatpush.xpose.msra.mxu0 0.0
    %784 = vmatpush.xpose.msra.mxu0 0.0
    %785 = vmatpush.xpose.msra.mxu0 0.0
    %786 = vmatpush.xpose.msra.mxu0 0.0
    %787 = vmatpush.xpose.msra.mxu0 0.0
    %788 = vmatpush.xpose.msra.mxu0 %v771
    %789 = vmatmul.f32.gmra.mxu0 %v769
    %v790 = vpop.f32.mrf.mxu0
    %v791 = vadd.f32 0.0, %v790
    %792 = vdwg.mxu0
    %794 = vrot.lane.b32.xlu0 %v764, 96
    %v795 = vpop.permute.xlu0 %794
    %v796 = vsel %vm145, %v764, 0
    %v798 = vsel %vm145, %v795, 0
    %800 = vmatpush.xpose.msra.mxu0 0.0
    %801 = vmatpush.xpose.msra.mxu0 0.0
    %802 = vmatpush.xpose.msra.mxu0 0.0
    %803 = vmatpush.xpose.msra.mxu0 0.0
    %804 = vmatpush.xpose.msra.mxu0 0.0
    %805 = vmatpush.xpose.msra.mxu0 0.0
    %806 = vmatpush.xpose.msra.mxu0 0.0
    %807 = vmatpush.xpose.msra.mxu0 0.0
    %808 = vmatpush.xpose.msra.mxu0 0.0
    %809 = vmatpush.xpose.msra.mxu0 0.0
    %810 = vmatpush.xpose.msra.mxu0 0.0
    %811 = vmatpush.xpose.msra.mxu0 0.0
    %812 = vmatpush.xpose.msra.mxu0 0.0
    %813 = vmatpush.xpose.msra.mxu0 0.0
    %814 = vmatpush.xpose.msra.mxu0 0.0
    %815 = vmatpush.xpose.msra.mxu0 %v798
    %816 = vmatmul.f32.gmra.mxu0 %v796
    %v817 = vpop.f32.mrf.mxu0
    %v818 = vadd.f32 0.0, %v817
    %819 = vdwg.mxu0
    %v820 = vmul.f32 %v791, 0.25
    %v821 = vmul.f32 %v818, 0.25
    %v822 = vadd.f32 %v820, %v199
    %v823 = vadd.f32 %v821, %v200
    %v824 = vsel %vm205, %v822, -inf
    %825 = vmax.xlane.f32.xlu0 %v824
    %v826 = vpop.xlane.xlu0 %825
    %v827 = vsel %vm205, %v823, -inf
    %828 = vmax.xlane.f32.xlu0 %v827
    %v829 = vpop.xlane.xlu0 %828
    %v830 = vsub.f32 %v822, %v826
    %v831 = vsub.f32 %v823, %v829
    %v832 = vmul.f32 %v830, 1.442695
    %v833 = vpow.pop %v832
    %v834 = vmul.f32 %v831, 1.442695
    %v835 = vpow.pop %v834
    %v836 = vsel %vm205, %v833, 0.0
    %837 = vadd.xlane.f32.xlu0 %v836
    %v838 = vpop.xlane.xlu0 %837
    %v839 = vsel %vm205, %v835, 0.0
    %840 = vadd.xlane.f32.xlu0 %v839
    %v841 = vpop.xlane.xlu0 %840
    %v842 = vrcp.pop %v838
    %v843 = vmul.f32 %v838, %v842
    %v844 = vsub.f32 1.0, %v843
    %v845 = vmul.f32 %v842, %v844
    %v846 = vadd.f32 %v842, %v845
    %vm847 = vweird.f32 %v838
    %vm848 = vweird.f32 %v842
    %vm849 = vmor %vm847, %vm848
    %v850 = vsel %vm849, %v842, %v846
    %v851 = vand.u32 2147483647, %v838
    %vm852 = vcmp.eq.f32.partialorder %v851, 8.507059e+37
    %v853 = vand.u32 %v838, 2147483648
    %v854 = vor.u32 1.1754944e-38, %v853
    %v855 = vsel %vm852, %v854, %v850
    %v856 = vmul.f32 %v833, %v855
    %v857 = vrcp.pop %v841
    %v858 = vmul.f32 %v841, %v857
    %v859 = vsub.f32 1.0, %v858
    %v860 = vmul.f32 %v857, %v859
    %v861 = vadd.f32 %v857, %v860
    %vm862 = vweird.f32 %v841
    %vm863 = vweird.f32 %v857
    %vm864 = vmor %vm862, %vm863
    %v865 = vsel %vm864, %v857, %v861
    %v866 = vand.u32 2147483647, %v841
    %vm867 = vcmp.eq.f32.partialorder %v866, 8.507059e+37
    %v868 = vand.u32 %v841, 2147483648
    %v869 = vor.u32 1.1754944e-38, %v868
    %v870 = vsel %vm867, %v869, %v865
    %v871 = vmul.f32 %v835, %v870
    %872 = vrot.lane.b32.xlu0 %v761, 64
    %v873 = vpop.permute.xlu0 %872
    %v876 = vsel %vm205, %v856, 0
    %878 = vmatpush.msra.mxu0 0.0
    %879 = vmatpush.msra.mxu0 0.0
    %880 = vmatpush.msra.mxu0 0.0
    %881 = vmatpush.msra.mxu0 0.0
    %882 = vmatpush.msra.mxu0 0.0
    %883 = vmatpush.msra.mxu0 0.0
    %884 = vmatpush.msra.mxu0 0.0
    %885 = vmatpush.msra.mxu0 0.0
    %886 = vmatpush.msra.mxu0 0.0
    %887 = vmatpush.msra.mxu0 0.0
    %888 = vmatpush.msra.mxu0 0.0
    %889 = vmatpush.msra.mxu0 0.0
    %890 = vmatpush.msra.mxu0 0.0
    %891 = vmatpush.msra.mxu0 0.0
    %892 = vmatpush.msra.mxu0 0.0
    %893 = vmatpush.msra.mxu0 %v873
    %894 = vmatmul.f32.gmra.mxu0 %v876
    %v895 = vpop.f32.mrf.mxu0
    %v896 = vadd.f32 0.0, %v895
    %897 = vdwg.mxu0
    %898 = vrot.lane.b32.xlu0 %v764, 64
    %v899 = vpop.permute.xlu0 %898
    %v902 = vsel %vm205, %v871, 0
    %904 = vmatpush.msra.mxu0 0.0
    %905 = vmatpush.msra.mxu0 0.0
    %906 = vmatpush.msra.mxu0 0.0
    %907 = vmatpush.msra.mxu0 0.0
    %908 = vmatpush.msra.mxu0 0.0
    %909 = vmatpush.msra.mxu0 0.0
    %910 = vmatpush.msra.mxu0 0.0
    %911 = vmatpush.msra.mxu0 0.0
    %912 = vmatpush.msra.mxu0 0.0
    %913 = vmatpush.msra.mxu0 0.0
    %914 = vmatpush.msra.mxu0 0.0
    %915 = vmatpush.msra.mxu0 0.0
    %916 = vmatpush.msra.mxu0 0.0
    %917 = vmatpush.msra.mxu0 0.0
    %918 = vmatpush.msra.mxu0 0.0
    %919 = vmatpush.msra.mxu0 %v899
    %920 = vmatmul.f32.gmra.mxu0 %v902
    %v921 = vpop.f32.mrf.mxu0
    %v922 = vadd.f32 0.0, %v921
    %923 = vdwg.mxu0
    %924 = vrot.lane.b32.xlu0 %v761, 112
    %v925 = vpop.permute.xlu0 %924
    %926 = vrot.lane.b32.xlu0 %v761, 80
    %v927 = vpop.permute.xlu0 %926
    %v928 = vsel %vm145, %v925, 0
    %v930 = vsel %vm145, %v927, 0
    %932 = vmatpush.xpose.msra.mxu0 0.0
    %933 = vmatpush.xpose.msra.mxu0 0.0
    %934 = vmatpush.xpose.msra.mxu0 0.0
    %935 = vmatpush.xpose.msra.mxu0 0.0
    %936 = vmatpush.xpose.msra.mxu0 0.0
    %937 = vmatpush.xpose.msra.mxu0 0.0
    %938 = vmatpush.xpose.msra.mxu0 0.0
    %939 = vmatpush.xpose.msra.mxu0 0.0
    %940 = vmatpush.xpose.msra.mxu0 0.0
    %941 = vmatpush.xpose.msra.mxu0 0.0
    %942 = vmatpush.xpose.msra.mxu0 0.0
    %943 = vmatpush.xpose.msra.mxu0 0.0
    %944 = vmatpush.xpose.msra.mxu0 0.0
    %945 = vmatpush.xpose.msra.mxu0 0.0
    %946 = vmatpush.xpose.msra.mxu0 0.0
    %947 = vmatpush.xpose.msra.mxu0 %v930
    %948 = vmatmul.f32.gmra.mxu0 %v928
    %v949 = vpop.f32.mrf.mxu0
    %v950 = vadd.f32 0.0, %v949
    %951 = vdwg.mxu0
    %952 = vrot.lane.b32.xlu0 %v764, 112
    %v953 = vpop.permute.xlu0 %952
    %954 = vrot.lane.b32.xlu0 %v764, 80
    %v955 = vpop.permute.xlu0 %954
    %v956 = vsel %vm145, %v953, 0
    %v958 = vsel %vm145, %v955, 0
    %960 = vmatpush.xpose.msra.mxu0 0.0
    %961 = vmatpush.xpose.msra.mxu0 0.0
    %962 = vmatpush.xpose.msra.mxu0 0.0
    %963 = vmatpush.xpose.msra.mxu0 0.0
    %964 = vmatpush.xpose.msra.mxu0 0.0
    %965 = vmatpush.xpose.msra.mxu0 0.0
    %966 = vmatpush.xpose.msra.mxu0 0.0
    %967 = vmatpush.xpose.msra.mxu0 0.0
    %968 = vmatpush.xpose.msra.mxu0 0.0
    %969 = vmatpush.xpose.msra.mxu0 0.0
    %970 = vmatpush.xpose.msra.mxu0 0.0
    %971 = vmatpush.xpose.msra.mxu0 0.0
    %972 = vmatpush.xpose.msra.mxu0 0.0
    %973 = vmatpush.xpose.msra.mxu0 0.0
    %974 = vmatpush.xpose.msra.mxu0 0.0
    %975 = vmatpush.xpose.msra.mxu0 %v958
    %976 = vmatmul.f32.gmra.mxu0 %v956
    %v977 = vpop.f32.mrf.mxu0
    %v978 = vadd.f32 0.0, %v977
    %979 = vdwg.mxu0
    %v980 = vmul.f32 %v950, 0.25
    %v981 = vmul.f32 %v978, 0.25
    %v982 = vadd.f32 %v980, %v199
    %v983 = vadd.f32 %v981, %v200
    %v984 = vsel %vm205, %v982, -inf
    %985 = vmax.xlane.f32.xlu0 %v984
    %v986 = vpop.xlane.xlu0 %985
    %v987 = vsel %vm205, %v983, -inf
    %988 = vmax.xlane.f32.xlu0 %v987
    %v989 = vpop.xlane.xlu0 %988
    %v990 = vsub.f32 %v982, %v986
    %v991 = vsub.f32 %v983, %v989
    %v992 = vmul.f32 %v990, 1.442695
    %v993 = vpow.pop %v992
    %v994 = vmul.f32 %v991, 1.442695
    %v995 = vpow.pop %v994
    %v996 = vsel %vm205, %v993, 0.0
    %997 = vadd.xlane.f32.xlu0 %v996
    %v998 = vpop.xlane.xlu0 %997
    %v999 = vsel %vm205, %v995, 0.0
    %1000 = vadd.xlane.f32.xlu0 %v999
    %v1001 = vpop.xlane.xlu0 %1000
    %v1002 = vrcp.pop %v998
    %v1003 = vmul.f32 %v998, %v1002
    %v1004 = vsub.f32 1.0, %v1003
    %v1005 = vmul.f32 %v1002, %v1004
    %v1006 = vadd.f32 %v1002, %v1005
    %vm1007 = vweird.f32 %v998
    %vm1008 = vweird.f32 %v1002
    %vm1009 = vmor %vm1007, %vm1008
    %v1010 = vsel %vm1009, %v1002, %v1006
    %v1011 = vand.u32 2147483647, %v998
    %vm1012 = vcmp.eq.f32.partialorder %v1011, 8.507059e+37
    %v1013 = vand.u32 %v998, 2147483648
    %v1014 = vor.u32 1.1754944e-38, %v1013
    %v1015 = vsel %vm1012, %v1014, %v1010
    %v1016 = vmul.f32 %v993, %v1015
    %v1017 = vrcp.pop %v1001
    %v1018 = vmul.f32 %v1001, %v1017
    %v1019 = vsub.f32 1.0, %v1018
    %v1020 = vmul.f32 %v1017, %v1019
    %v1021 = vadd.f32 %v1017, %v1020
    %vm1022 = vweird.f32 %v1001
    %vm1023 = vweird.f32 %v1017
    %vm1024 = vmor %vm1022, %vm1023
    %v1025 = vsel %vm1024, %v1017, %v1021
    %v1026 = vand.u32 2147483647, %v1001
    %vm1027 = vcmp.eq.f32.partialorder %v1026, 8.507059e+37
    %v1028 = vand.u32 %v1001, 2147483648
    %v1029 = vor.u32 1.1754944e-38, %v1028
    %v1030 = vsel %vm1027, %v1029, %v1025
    %v1031 = vmul.f32 %v995, %v1030
    %1032 = vrot.lane.b32.xlu0 %v761, 48
    %v1033 = vpop.permute.xlu0 %1032
    %v1036 = vsel %vm205, %v1016, 0
    %1038 = vmatpush.msra.mxu0 0.0
    %1039 = vmatpush.msra.mxu0 0.0
    %1040 = vmatpush.msra.mxu0 0.0
    %1041 = vmatpush.msra.mxu0 0.0
    %1042 = vmatpush.msra.mxu0 0.0
    %1043 = vmatpush.msra.mxu0 0.0
    %1044 = vmatpush.msra.mxu0 0.0
    %1045 = vmatpush.msra.mxu0 0.0
    %1046 = vmatpush.msra.mxu0 0.0
    %1047 = vmatpush.msra.mxu0 0.0
    %1048 = vmatpush.msra.mxu0 0.0
    %1049 = vmatpush.msra.mxu0 0.0
    %1050 = vmatpush.msra.mxu0 0.0
    %1051 = vmatpush.msra.mxu0 0.0
    %1052 = vmatpush.msra.mxu0 0.0
    %1053 = vmatpush.msra.mxu0 %v1033
    %1054 = vmatmul.f32.gmra.mxu0 %v1036
    %v1055 = vpop.f32.mrf.mxu0
    %v1056 = vadd.f32 0.0, %v1055
    %1057 = vdwg.mxu0
    %1058 = vrot.lane.b32.xlu0 %v764, 48
    %v1059 = vpop.permute.xlu0 %1058
    %v1062 = vsel %vm205, %v1031, 0
    %1064 = vmatpush.msra.mxu0 0.0
    %1065 = vmatpush.msra.mxu0 0.0
    %1066 = vmatpush.msra.mxu0 0.0
    %1067 = vmatpush.msra.mxu0 0.0
    %1068 = vmatpush.msra.mxu0 0.0
    %1069 = vmatpush.msra.mxu0 0.0
    %1070 = vmatpush.msra.mxu0 0.0
    %1071 = vmatpush.msra.mxu0 0.0
    %1072 = vmatpush.msra.mxu0 0.0
    %1073 = vmatpush.msra.mxu0 0.0
    %1074 = vmatpush.msra.mxu0 0.0
    %1075 = vmatpush.msra.mxu0 0.0
    %1076 = vmatpush.msra.mxu0 0.0
    %1077 = vmatpush.msra.mxu0 0.0
    %1078 = vmatpush.msra.mxu0 0.0
    %1079 = vmatpush.msra.mxu0 %v1059
    %1080 = vmatmul.f32.gmra.mxu0 %v1062
    %v1081 = vpop.f32.mrf.mxu0
    %v1082 = vadd.f32 0.0, %v1081
    %1083 = vdwg.mxu0
    %1086 = vrot.lane.b32.xlu0 %v1056, 16
    %v1087 = vpop.permute.xlu0 %1086
    %1088 = vrot.lane.b32.xlu0 %v1082, 16
    %v1089 = vpop.permute.xlu0 %1088
    %v1092 = vsel %vm145, %v896, %v1087
    %v1093 = vsel %vm145, %v922, %v1089
    %1098 = vrot.lane.b32.xlu0 %v723, 32
    %v1099 = vpop.permute.xlu0 %1098
    %1100 = vrot.lane.b32.xlu0 %v724, 32
    %v1101 = vpop.permute.xlu0 %1100
    %1102 = vrot.lane.b32.xlu0 %v725, 32
    %v1103 = vpop.permute.xlu0 %1102
    %1104 = vrot.lane.b32.xlu0 %v726, 32
    %v1105 = vpop.permute.xlu0 %1104
    %1110 = vrot.lane.b32.xlu0 %v735, 32
    %v1111 = vpop.permute.xlu0 %1110
    %v1114 = vsel %vm42, %v1092, 0
    %v1117 = vsel %vm42, %v1093, 0
    %1119 = vmatpush.msra.mxu0 0.0
    %1120 = vmatpush.msra.mxu0 0.0
    %1121 = vmatpush.msra.mxu0 0.0
    %1122 = vmatpush.msra.mxu0 0.0
    %1123 = vmatpush.msra.mxu0 0.0
    %1124 = vmatpush.msra.mxu0 0.0
    %1125 = vmatpush.msra.mxu0 0.0
    %1126 = vmatpush.msra.mxu0 0.0
    %1127 = vmatpush.msra.mxu0 0.0
    %1128 = vmatpush.msra.mxu0 0.0
    %1129 = vmatpush.msra.mxu0 0.0
    %1130 = vmatpush.msra.mxu0 0.0
    %1131 = vmatpush.msra.mxu0 %v1105
    %1132 = vmatpush.msra.mxu0 %v1103
    %1133 = vmatpush.msra.mxu0 %v1101
    %1134 = vmatpush.msra.mxu0 %v1099
    %1135 = vmatmul.f32.gmra.mxu0 %v1114
    %v1136 = vpop.f32.mrf.mxu0
    %v1137 = vadd.f32 %v1111, %v1136
    %1138 = vmatmul.f32.gmra.mxu0 %v1117
    %v1139 = vpop.f32.mrf.mxu0
    %v1140 = vadd.f32 %v1111, %v1139
    %1141 = vdwg.mxu0
    %v1142 = vadd.f32 %v720, %v1137
    %v1143 = vadd.f32 %v721, %v1140
    %v1144 = vsel %vm42, %v1142, 0.0
    %1145 = vadd.xlane.f32.xlu0 %v1144
    %v1146 = vpop.xlane.xlu0 %1145
    %v1147 = vsel %vm42, %v1143, 0.0
    %1148 = vadd.xlane.f32.xlu0 %v1147
    %v1149 = vpop.xlane.xlu0 %1148
    %v1150 = vmul.f32 %v1146, %v55
    %v1151 = vmul.f32 %v1149, %v55
    %v1152 = vsub.f32 %v1142, %v1150
    %v1153 = vsub.f32 %v1143, %v1151
    %v1154 = vmul.f32 %v1152, %v1152
    %v1155 = vmul.f32 %v1153, %v1153
    %v1156 = vsel %vm42, %v1154, 0.0
    %1157 = vadd.xlane.f32.xlu0 %v1156
    %v1158 = vpop.xlane.xlu0 %1157
    %v1159 = vsel %vm42, %v1155, 0.0
    %1160 = vadd.xlane.f32.xlu0 %v1159
    %v1161 = vpop.xlane.xlu0 %1160
    %v1162 = vmul.f32 %v1158, %v55
    %v1163 = vmul.f32 %v1161, %v55
    %v1164 = vadd.f32 %v1162, 1e-12
    %v1165 = vadd.f32 %v1163, 1e-12
    %v1166 = vrsqrt.pop %v1164
    %v1167 = vmul.f32 %v1166, %v1164
    %v1168 = vmul.f32 %v1167, %v1166
    %v1169 = vmul.f32 0.5, %v1168
    %v1170 = vsub.f32 1.5, %v1169
    %v1171 = vmul.f32 %v1166, %v1170
    %vm1172 = vweird.f32 %v1164
    %vm1173 = vweird.f32 %v1166
    %vm1174 = vmor %vm1172, %vm1173
    %v1175 = vsel %vm1174, %v1166, %v1171
    %v1176 = vrsqrt.pop %v1165
    %v1177 = vmul.f32 %v1176, %v1165
    %v1178 = vmul.f32 %v1177, %v1176
    %v1179 = vmul.f32 0.5, %v1178
    %v1180 = vsub.f32 1.5, %v1179
    %v1181 = vmul.f32 %v1176, %v1180
    %vm1182 = vweird.f32 %v1165
    %vm1183 = vweird.f32 %v1176
    %vm1184 = vmor %vm1182, %vm1183
    %v1185 = vsel %vm1184, %v1176, %v1181
    %v1186 = vmul.f32 %v1152, %v1175
    %v1187 = vmul.f32 %v1153, %v1185
    %v1188 = vperm.slane %v729, 0
    %v1189 = vmul.f32 %v1186, %v1188
    %v1190 = vmul.f32 %v1187, %v1188
    %v1191 = vperm.slane %v730, 0
    %v1192 = vadd.f32 %v1189, %v1191
    %v1193 = vadd.f32 %v1190, %v1191
    %s1194 = scalar_lea.vmem %s5, 32
    %v1195 = vld [vmem:[%s1194] sm:$0xff]
    %v1196 = vld [vmem:[%s1194 + $0x8] sm:$0xff]
    %v1197 = vld [vmem:[%s1194 + $0x10] sm:$0xff]
    %v1198 = vld [vmem:[%s1194 + $0x18] sm:$0xff]
    %s1199 = scalar_lea.vmem %s6, 1
    %v1200 = vld [vmem:[%s1199] sm:$0x1]
    %v1202 = vperm.slane %v1200, 0
    %v1205 = vsel %vm42, %v1192, 0
    %v1208 = vsel %vm42, %v1193, 0
    %1210 = vmatpush.msra.mxu0 0.0
    %1211 = vmatpush.msra.mxu0 0.0
    %1212 = vmatpush.msra.mxu0 0.0
    %1213 = vmatpush.msra.mxu0 0.0
    %1214 = vmatpush.msra.mxu0 0.0
    %1215 = vmatpush.msra.mxu0 0.0
    %1216 = vmatpush.msra.mxu0 0.0
    %1217 = vmatpush.msra.mxu0 0.0
    %1218 = vmatpush.msra.mxu0 0.0
    %1219 = vmatpush.msra.mxu0 0.0
    %1220 = vmatpush.msra.mxu0 0.0
    %1221 = vmatpush.msra.mxu0 0.0
    %1222 = vmatpush.msra.mxu0 %v1198
    %1223 = vmatpush.msra.mxu0 %v1197
    %1224 = vmatpush.msra.mxu0 %v1196
    %1225 = vmatpush.msra.mxu0 %v1195
    %1226 = vmatmul.f32.gmra.mxu0 %v1205
    %v1227 = vpop.f32.mrf.mxu0
    %v1228 = vadd.f32 %v1202, %v1227
    %1229 = vmatmul.f32.gmra.mxu0 %v1208
    %v1230 = vpop.f32.mrf.mxu0
    %v1231 = vadd.f32 %v1202, %v1230
    %1232 = vdwg.mxu0
    %v1233 = vmul.f32 %v1228, 0.5
    %v1234 = vmul.f32 %v1231, 0.5
    %v1235 = vmul.f32 %v1228, 0.044715
    %v1236 = vmul.f32 %v1231, 0.044715
    %v1237 = vmul.f32 %v1235, %v1228
    %v1238 = vmul.f32 %v1236, %v1231
    %v1239 = vmul.f32 %v1237, %v1228
    %v1240 = vmul.f32 %v1238, %v1231
    %v1241 = vadd.f32 %v1228, %v1239
    %v1242 = vadd.f32 %v1231, %v1240
    %v1243 = vmul.f32 %v1241, 0.7978846
    %v1244 = vmul.f32 %v1242, 0.7978846
    %v1245 = vtanh.pop %v1243
    %v1246 = vtanh.pop %v1244
    %v1247 = vadd.f32 %v1245, 1.0
    %v1248 = vadd.f32 %v1246, 1.0
    %v1249 = vmul.f32 %v1233, %v1247
    %v1250 = vmul.f32 %v1234, %v1248
    %s1251 = scalar_lea.vmem %s7, 64
    %v1252 = vld [vmem:[%s1251] sm:$0xff]
    %v1253 = vld [vmem:[%s1251 + $0x8] sm:$0xff]
    %v1254 = vld [vmem:[%s1251 + $0x10] sm:$0xff]
    %v1255 = vld [vmem:[%s1251 + $0x18] sm:$0xff]
    %v1256 = vld [vmem:[%s1251 + $0x20] sm:$0xff]
    %v1257 = vld [vmem:[%s1251 + $0x28] sm:$0xff]
    %v1258 = vld [vmem:[%s1251 + $0x30] sm:$0xff]
    %v1259 = vld [vmem:[%s1251 + $0x38] sm:$0xff]
    %v1260 = vperm.slane %v731, 0
    %v1262 = vsel %vm640, %v1249, 0
    %v1265 = vsel %vm640, %v1250, 0
    %1267 = vmatpush.msra.mxu0 0.0
    %1268 = vmatpush.msra.mxu0 0.0
    %1269 = vmatpush.msra.mxu0 0.0
    %1270 = vmatpush.msra.mxu0 0.0
    %1271 = vmatpush.msra.mxu0 0.0
    %1272 = vmatpush.msra.mxu0 0.0
    %1273 = vmatpush.msra.mxu0 0.0
    %1274 = vmatpush.msra.mxu0 0.0
    %1275 = vmatpush.msra.mxu0 %v1259
    %1276 = vmatpush.msra.mxu0 %v1258
    %1277 = vmatpush.msra.mxu0 %v1257
    %1278 = vmatpush.msra.mxu0 %v1256
    %1279 = vmatpush.msra.mxu0 %v1255
    %1280 = vmatpush.msra.mxu0 %v1254
    %1281 = vmatpush.msra.mxu0 %v1253
    %1282 = vmatpush.msra.mxu0 %v1252
    %1283 = vmatmul.f32.gmra.mxu0 %v1262
    %v1284 = vpop.f32.mrf.mxu0
    %v1285 = vadd.f32 %v1260, %v1284
    %1286 = vmatmul.f32.gmra.mxu0 %v1265
    %v1287 = vpop.f32.mrf.mxu0
    %v1288 = vadd.f32 %v1260, %v1287
    %1289 = vdwg.mxu0
    %v1290 = vadd.f32 %v1192, %v1285
    %v1291 = vadd.f32 %v1193, %v1288
    %v1292 = vsel %vm42, %v1290, 0.0
    %1293 = vadd.xlane.f32.xlu0 %v1292
    %v1294 = vpop.xlane.xlu0 %1293
    %v1295 = vsel %vm42, %v1291, 0.0
    %1296 = vadd.xlane.f32.xlu0 %v1295
    %v1297 = vpop.xlane.xlu0 %1296
    %v1298 = vmul.f32 %v1294, %v55
    %v1299 = vmul.f32 %v1297, %v55
    %v1300 = vsub.f32 %v1290, %v1298
    %v1301 = vsub.f32 %v1291, %v1299
    %v1302 = vmul.f32 %v1300, %v1300
    %v1303 = vmul.f32 %v1301, %v1301
    %v1304 = vsel %vm42, %v1302, 0.0
    %1305 = vadd.xlane.f32.xlu0 %v1304
    %v1306 = vpop.xlane.xlu0 %1305
    %v1307 = vsel %vm42, %v1303, 0.0
    %1308 = vadd.xlane.f32.xlu0 %v1307
    %v1309 = vpop.xlane.xlu0 %1308
    %v1310 = vmul.f32 %v1306, %v55
    %v1311 = vmul.f32 %v1309, %v55
    %v1312 = vadd.f32 %v1310, 1e-12
    %v1313 = vadd.f32 %v1311, 1e-12
    %v1314 = vrsqrt.pop %v1312
    %v1315 = vmul.f32 %v1314, %v1312
    %v1316 = vmul.f32 %v1315, %v1314
    %v1317 = vmul.f32 0.5, %v1316
    %v1318 = vsub.f32 1.5, %v1317
    %v1319 = vmul.f32 %v1314, %v1318
    %vm1320 = vweird.f32 %v1312
    %vm1321 = vweird.f32 %v1314
    %vm1322 = vmor %vm1320, %vm1321
    %v1323 = vsel %vm1322, %v1314, %v1319
    %v1324 = vrsqrt.pop %v1313
    %v1325 = vmul.f32 %v1324, %v1313
    %v1326 = vmul.f32 %v1325, %v1324
    %v1327 = vmul.f32 0.5, %v1326
    %v1328 = vsub.f32 1.5, %v1327
    %v1329 = vmul.f32 %v1324, %v1328
    %vm1330 = vweird.f32 %v1313
    %vm1331 = vweird.f32 %v1324
    %vm1332 = vmor %vm1330, %vm1331
    %v1333 = vsel %vm1332, %v1324, %v1329
    %v1334 = vmul.f32 %v1300, %v1323
    %v1335 = vmul.f32 %v1301, %v1333
    %v1336 = vperm.slane %v732, 0
    %v1337 = vmul.f32 %v1334, %v1336
    %v1338 = vmul.f32 %v1335, %v1336
    %v1339 = vperm.slane %v733, 0
    %v1340 = vadd.f32 %v1337, %v1339
    %v1341 = vadd.f32 %v1338, %v1339
    %v1343 = vrot.slane %v1341, 7
    %vm1345 = vcmask 1040384
    %v1346 = vsel %vm1345, %v1340, %v1343
    %v1347 = vld [vmem:[%s8] sm:$0xff]
    %v1348 = vld [vmem:[%s8 + $0x8] sm:$0xff]
    %v1349 = vld [vmem:[%s8 + $0x10] sm:$0xff]
    %v1350 = vld [vmem:[%s8 + $0x18] sm:$0xff]
    %v1351 = vld [vmem:[%s2 + $0x2] sm:$0x1]
    %v1352 = vperm.slane %v1351, 0
    %v1354 = vsel %vm42, %v1346, 0
    %1356 = vmatpush.msra.mxu0 0.0
    %1357 = vmatpush.msra.mxu0 0.0
    %1358 = vmatpush.msra.mxu0 0.0
    %1359 = vmatpush.msra.mxu0 0.0
    %1360 = vmatpush.msra.mxu0 0.0
    %1361 = vmatpush.msra.mxu0 0.0
    %1362 = vmatpush.msra.mxu0 0.0
    %1363 = vmatpush.msra.mxu0 0.0
    %1364 = vmatpush.msra.mxu0 0.0
    %1365 = vmatpush.msra.mxu0 0.0
    %1366 = vmatpush.msra.mxu0 0.0
    %1367 = vmatpush.msra.mxu0 0.0
    %1368 = vmatpush.msra.mxu0 %v1350
    %1369 = vmatpush.msra.mxu0 %v1349
    %1370 = vmatpush.msra.mxu0 %v1348
    %1371 = vmatpush.msra.mxu0 %v1347
    %1372 = vmatmul.f32.gmra.mxu0 %v1354
    %v1373 = vpop.f32.mrf.mxu0
    %v1374 = vadd.f32 %v1352, %v1373
    %1375 = vdwg.mxu0
    %v1376 = vtanh.pop %v1374
    %vm1377 = vcmask 254976
    %1378 = vst.msk [vmem:[#allocation2] sm:$0x3] %vm1377, %v1376
    // Predicated region
    $region38: #{bert_forward.1} parent=1 // pred_check
      _
    $region39: #{bert_forward.1} parent=1 // pred_check_branch
      %1380 = sbr.rel (0) target = $region41
    $region40: #{bert_forward.1} parent=1 // pred_region
      %1382 = vsyncadd [#allocation3], 0
      %s1384 = sshll.u32 [#allocation2], 4
      %s1385 = int_to_ptr.vmem [resolvable:$true] %s1384
      %s1386 = sshll.u32 %s9, 4
      %s1387 = int_to_ptr.hbm [resolvable:$true] %s1386
      %1389 = dma.vmem_to_hbm [thread:$0]  %s1385, 32, %s1387, [#allocation3]
    $region41: #{bert_forward.1} parent=1 // pred_fallthru
      _
    // Predicated region
    $region42: #{bert_forward.1} parent=1 // pred_check
      _
    $region43: #{bert_forward.1} parent=1 // pred_check_branch
      %1391 = sbr.rel (0) target = $region45
    $region44: #{bert_forward.1} parent=1 // pred_region
      %1393 = dma.done [#allocation3], 32
    $region45: #{bert_forward.1} parent=1 // pred_fallthru
      _
    %1394 = vsyncpa [#allocation3], 1

</llo_original>
